<compile_context>
chip_gen: v5e
topology: v5e:2x2
jax: 0.10.0
libtpu: 0.0.40
codegen_flags: <defaults>
</compile_context>

<pallas_src>
import functools

import jax
import jax.numpy as jnp
from jax.experimental import pallas as pl
from jax.experimental.pallas import tpu as pltpu

INPUT_SIZE = 64 * 64          # 4096, from MMDataLoader (64x64 flattened image)
HIDDEN_SIZES = [128, 64]
OUTPUT_SIZE = 10
OUT_PAD = 128                 # lane-pad logits/probs to a full 128-lane register


def _round_up(x, m):
    return (x + m - 1) // m * m


def mlp_kernel(x_ref, w1_ref, b1_ref, w2_ref, b2_ref, w3_ref, b3_ref, o_ref,
               *, out_valid):
    # ---- Linear 1 + ReLU ----
    # x streams in as f32 (native dtype, no wrapper pre-pass); cast to bf16 on the
    # VPU just before feeding the MXU.  Accumulate in f32.
    x = x_ref[...].astype(jnp.bfloat16)                      # (bt, 4096)
    h1 = jnp.dot(x, w1_ref[...], preferred_element_type=jnp.float32) + b1_ref[...]
    h1 = jnp.maximum(h1, 0.0)
    # ---- Linear 2 + ReLU ----
    h2 = jnp.dot(h1.astype(jnp.bfloat16), w2_ref[...],
                 preferred_element_type=jnp.float32) + b2_ref[...]
    h2 = jnp.maximum(h2, 0.0)
    # ---- Linear 3 (lane-padded to 128 output columns) ----
    logits = jnp.dot(h2.astype(jnp.bfloat16), w3_ref[...],
                     preferred_element_type=jnp.float32) + b3_ref[...]
    # ---- Softmax over the first `out_valid` (real) columns ----
    # Padded columns carry exactly-zero logits (zero weight cols + zero bias), so the
    # row max may include 0 -- still a valid softmax shift; only the exp is masked.
    col = jax.lax.broadcasted_iota(jnp.int32, logits.shape, 1)
    valid = col < out_valid
    m = jnp.max(logits, axis=-1, keepdims=True)
    e = jnp.where(valid, jnp.exp(logits - m), 0.0)
    s = jnp.sum(e, axis=-1, keepdims=True)
    o_ref[...] = (e / s).astype(o_ref.dtype)                 # exact divide: rows sum to 1


def digit_classifier_forward(x, params, *, batch_tile=512):
    """Fused MLP forward. x: (B, 4096) f32; params = [w1,b1,w2,b2,w3,b3] with
    weights stored as (in, out) (torch nn.Linear weight transposed)."""
    w1, b1, w2, b2, w3, b3 = params
    B, IN = x.shape
    H1 = w1.shape[1]
    H2 = w2.shape[1]
    OUT = w3.shape[1]

    # Batch tile: multiple of 8 (sublane rule).  For B > 8 guarantee >= 2 grid steps
    # so both v7x TensorCores get work on the "parallel" axis; large batches use the
    # full batch_tile.
    if B > 8:
        bt = min(_round_up(batch_tile, 8), _round_up(pl.cdiv(B, 2), 8))
    else:
        bt = _round_up(B, 8)
    grid = (pl.cdiv(B, bt),)   # ragged last block handled by Pallas; no padded copy of x

    # Tiny one-time weight prep: bf16 MXU operands, lane-pad the last layer to 128
    # output columns, biases as (1, H) f32 rows.
    w1b = w1.astype(jnp.bfloat16)
    w2b = w2.astype(jnp.bfloat16)
    w3b = jnp.pad(w3, ((0, 0), (0, OUT_PAD - OUT))).astype(jnp.bfloat16)
    b1r = b1.reshape(1, H1).astype(jnp.float32)
    b2r = b2.reshape(1, H2).astype(jnp.float32)
    b3r = jnp.pad(b3, (0, OUT_PAD - OUT)).reshape(1, OUT_PAD).astype(jnp.float32)

    kernel = functools.partial(mlp_kernel, out_valid=OUT)

    out = pl.pallas_call(
        kernel,
        out_shape=jax.ShapeDtypeStruct((B, OUT_PAD), jnp.float32),
        grid_spec=pltpu.PrefetchScalarGridSpec(
            num_scalar_prefetch=0,
            grid=grid,
            in_specs=[
                pl.BlockSpec((bt, IN), lambda i: (i, 0)),        # x tile (f32, streamed)
                pl.BlockSpec((IN, H1), lambda i: (0, 0)),        # W1 (grid-invariant)
                pl.BlockSpec((1, H1), lambda i: (0, 0)),         # b1
                pl.BlockSpec((H1, H2), lambda i: (0, 0)),        # W2
                pl.BlockSpec((1, H2), lambda i: (0, 0)),         # b2
                pl.BlockSpec((H2, OUT_PAD), lambda i: (0, 0)),   # W3 (lane-padded)
                pl.BlockSpec((1, OUT_PAD), lambda i: (0, 0)),    # b3 (lane-padded)
            ],
            out_specs=pl.BlockSpec((bt, OUT_PAD), lambda i: (i, 0)),
        ),
        compiler_params=pltpu.CompilerParams(
            dimension_semantics=("parallel",),
            # bt=512/f32 uses ~19 MiB; 40 MiB also covers bt=1024 on v5e/v6e and
            # stays well under v7x's 64 MiB physical VMEM (and v5e's 16 MiB scoped
            # default would otherwise cap the tile size).
            vmem_limit_bytes=40 * 1024 * 1024,
        ),
    )(x.astype(jnp.float32), w1b, b1r, w2b, b2r, w3b, b3r)

    return out[:B, :OUT]


def init_params(key, input_size, hidden_sizes, output_size):
    """Deterministic PyTorch-Linear-style init (uniform +-1/sqrt(fan_in))."""
    sizes = [input_size] + list(hidden_sizes) + [output_size]
    params = []
    for fan_in, fan_out in zip(sizes[:-1], sizes[1:]):
        key, kw, kb = jax.random.split(key, 3)
        bound = 1.0 / jnp.sqrt(fan_in)
        w = jax.random.uniform(kw, (fan_in, fan_out), jnp.float32, -bound, bound)
        b = jax.random.uniform(kb, (fan_out,), jnp.float32, -bound, bound)
        params.extend([w, b])
    return params


def reference_forward(x, params):
    w1, b1, w2, b2, w3, b3 = params
    h1 = jnp.maximum(x @ w1 + b1, 0.0)
    h2 = jnp.maximum(h1 @ w2 + b2, 0.0)
    logits = h2 @ w3 + b3
    return jax.nn.softmax(logits, axis=1)


if __name__ == "__main__":
    key = jax.random.PRNGKey(0)
    kx, kp = jax.random.split(key)

    B = 40  # small batch, not tile-aligned -> exercises the ragged last block
    x = jax.random.uniform(kx, (B, INPUT_SIZE), jnp.float32)  # images in [0, 1)
    params = init_params(kp, INPUT_SIZE, HIDDEN_SIZES, OUTPUT_SIZE)

    ref = reference_forward(x, params)

    # Default (perf) config: bt clamped to 24 for B=40 -> grid of 2, ragged last block.
    out = jax.block_until_ready(digit_classifier_forward(x, params))
    assert out.shape == (B, OUTPUT_SIZE)
    # bf16 MXU inputs -> loosened value tolerance vs the f32 reference.
    assert jnp.allclose(out, ref, atol=2e-2, rtol=2e-2), "mismatch vs JAX reference"
    assert jnp.allclose(jnp.sum(out, axis=1), 1.0, atol=1e-3), "softmax rows must sum to 1"

    # Multi-tile config: bt=16 -> grid of 3 tiles (last one ragged).
    out2 = jax.block_until_ready(digit_classifier_forward(x, params, batch_tile=16))
    assert out2.shape == (B, OUTPUT_SIZE)
    assert jnp.allclose(out2, ref, atol=2e-2, rtol=2e-2), "mismatch vs JAX reference (tiled)"
    assert jnp.allclose(jnp.sum(out2, axis=1), 1.0, atol=1e-3), "softmax rows must sum to 1 (tiled)"

    print("KERNEL_OK")
</pallas_src>

<mosaic_0001>
module attributes {stable_mosaic.version = 11 : i64} {
  func.func @mlp_kernel(%arg0: i32, %arg1: memref<24x4096xf32, #tpu.memory_space<vmem>>, %arg2: memref<4096x128xbf16, #tpu.memory_space<vmem>>, %arg3: memref<1x128xf32, #tpu.memory_space<vmem>>, %arg4: memref<128x64xbf16, #tpu.memory_space<vmem>>, %arg5: memref<1x64xf32, #tpu.memory_space<vmem>>, %arg6: memref<64x128xbf16, #tpu.memory_space<vmem>>, %arg7: memref<1x128xf32, #tpu.memory_space<vmem>>, %arg8: memref<24x128xf32, #tpu.memory_space<vmem>>) attributes {dimension_semantics = [#tpu.dimension_semantics<parallel>], iteration_bounds = array<i64: 2>, scalar_prefetch = 0 : i64, scratch_operands = 0 : i64, tpu.core_type = #tpu.core_type<tc>, window_params = [{transform_indices = @transform_0, window_bounds = array<i64: 24, 4096>}, {pipeline_mode = #tpu.pipeline_mode<synchronous>, transform_indices = @transform_1, window_bounds = array<i64: 4096, 128>}, {pipeline_mode = #tpu.pipeline_mode<synchronous>, transform_indices = @transform_2, window_bounds = array<i64: 1, 128>}, {pipeline_mode = #tpu.pipeline_mode<synchronous>, transform_indices = @transform_3, window_bounds = array<i64: 128, 64>}, {pipeline_mode = #tpu.pipeline_mode<synchronous>, transform_indices = @transform_4, window_bounds = array<i64: 1, 64>}, {pipeline_mode = #tpu.pipeline_mode<synchronous>, transform_indices = @transform_5, window_bounds = array<i64: 64, 128>}, {pipeline_mode = #tpu.pipeline_mode<synchronous>, transform_indices = @transform_6, window_bounds = array<i64: 1, 128>}, {transform_indices = @transform_7, window_bounds = array<i64: 24, 128>}]} {
    %c0 = arith.constant 0 : index
    %c0_0 = arith.constant 0 : index
    %0 = vector.load %arg1[%c0, %c0_0] : memref<24x4096xf32, #tpu.memory_space<vmem>>, vector<24x4096xf32>
    %1 = arith.truncf %0 : vector<24x4096xf32> to vector<24x4096xbf16>
    %c0_1 = arith.constant 0 : index
    %c0_2 = arith.constant 0 : index
    %2 = vector.load %arg2[%c0_1, %c0_2] : memref<4096x128xbf16, #tpu.memory_space<vmem>>, vector<4096x128xbf16>
    %cst = arith.constant dense<0.000000e+00> : vector<24x128xf32>
    %3 = tpu.matmul %1, %2, %cst {dimension_numbers = #tpu.dot_dimension_numbers<[1], [0], [0], [1], [0, 0, 1, 1], [], []>} : vector<24x4096xbf16>, vector<4096x128xbf16>, vector<24x128xf32> -> vector<24x128xf32>
    %c0_3 = arith.constant 0 : index
    %c0_4 = arith.constant 0 : index
    %4 = vector.load %arg3[%c0_3, %c0_4] : memref<1x128xf32, #tpu.memory_space<vmem>>, vector<1x128xf32>
    %5 = vector.broadcast %4 : vector<1x128xf32> to vector<24x128xf32>
    %6 = arith.addf %3, %5 : vector<24x128xf32>
    %cst_5 = arith.constant 0.000000e+00 : f32
    %7 = vector.broadcast %cst_5 : f32 to vector<24x128xf32>
    %8 = arith.maximumf %6, %7 : vector<24x128xf32>
    %9 = arith.truncf %8 : vector<24x128xf32> to vector<24x128xbf16>
    %c0_6 = arith.constant 0 : index
    %c0_7 = arith.constant 0 : index
    %10 = vector.load %arg4[%c0_6, %c0_7] : memref<128x64xbf16, #tpu.memory_space<vmem>>, vector<128x64xbf16>
    %cst_8 = arith.constant dense<0.000000e+00> : vector<24x64xf32>
    %11 = tpu.matmul %9, %10, %cst_8 {dimension_numbers = #tpu.dot_dimension_numbers<[1], [0], [0], [1], [0, 0, 1, 1], [], []>} : vector<24x128xbf16>, vector<128x64xbf16>, vector<24x64xf32> -> vector<24x64xf32>
    %c0_9 = arith.constant 0 : index
    %c0_10 = arith.constant 0 : index
    %12 = vector.load %arg5[%c0_9, %c0_10] : memref<1x64xf32, #tpu.memory_space<vmem>>, vector<1x64xf32>
    %13 = vector.broadcast %12 : vector<1x64xf32> to vector<24x64xf32>
    %14 = arith.addf %11, %13 : vector<24x64xf32>
    %cst_11 = arith.constant 0.000000e+00 : f32
    %15 = vector.broadcast %cst_11 : f32 to vector<24x64xf32>
    %16 = arith.maximumf %14, %15 : vector<24x64xf32>
    %17 = arith.truncf %16 : vector<24x64xf32> to vector<24x64xbf16>
    %c0_12 = arith.constant 0 : index
    %c0_13 = arith.constant 0 : index
    %18 = vector.load %arg6[%c0_12, %c0_13] : memref<64x128xbf16, #tpu.memory_space<vmem>>, vector<64x128xbf16>
    %cst_14 = arith.constant dense<0.000000e+00> : vector<24x128xf32>
    %19 = tpu.matmul %17, %18, %cst_14 {dimension_numbers = #tpu.dot_dimension_numbers<[1], [0], [0], [1], [0, 0, 1, 1], [], []>} : vector<24x64xbf16>, vector<64x128xbf16>, vector<24x128xf32> -> vector<24x128xf32>
    %c0_15 = arith.constant 0 : index
    %c0_16 = arith.constant 0 : index
    %20 = vector.load %arg7[%c0_15, %c0_16] : memref<1x128xf32, #tpu.memory_space<vmem>>, vector<1x128xf32>
    %21 = vector.broadcast %20 : vector<1x128xf32> to vector<24x128xf32>
    %22 = arith.addf %19, %21 : vector<24x128xf32>
    %23 = tpu.iota {dimensions = array<i32: 1>} : vector<24x128xi32>
    %c10_i32 = arith.constant 10 : i32
    %24 = vector.broadcast %c10_i32 : i32 to vector<24x128xi32>
    %25 = arith.cmpi slt, %23, %24 : vector<24x128xi32>
    %cst_17 = arith.constant dense<0xFF800000> : vector<24xf32>
    %26 = vector.multi_reduction <maximumf>, %22, %cst_17 [1] : vector<24x128xf32> to vector<24xf32>
    %27 = vector.shape_cast %26 : vector<24xf32> to vector<24x1xf32>
    %28 = vector.broadcast %27 : vector<24x1xf32> to vector<24x128xf32>
    %29 = arith.subf %22, %28 : vector<24x128xf32>
    %30 = math.exp %29 : vector<24x128xf32>
    %cst_18 = arith.constant 0.000000e+00 : f32
    %31 = vector.broadcast %cst_18 : f32 to vector<24x128xf32>
    %32 = arith.select %25, %30, %31 : vector<24x128xi1>, vector<24x128xf32>
    %cst_19 = arith.constant dense<0.000000e+00> : vector<24xf32>
    %33 = vector.multi_reduction <add>, %32, %cst_19 [1] : vector<24x128xf32> to vector<24xf32>
    %34 = vector.shape_cast %33 : vector<24xf32> to vector<24x1xf32>
    %35 = vector.broadcast %34 : vector<24x1xf32> to vector<24x128xf32>
    %36 = arith.divf %32, %35 : vector<24x128xf32>
    %c0_20 = arith.constant 0 : index
    %c0_21 = arith.constant 0 : index
    %37 = vector.load %arg8[%c0_20, %c0_21] : memref<24x128xf32, #tpu.memory_space<vmem>>, vector<24x128xf32>
    tpu.vector_store %arg8[%c0_20, %c0_21], %36 {strides = array<i32>} : memref<24x128xf32, #tpu.memory_space<vmem>>, vector<24x128xf32>,
    return
  }
  func.func @transform_0(%arg0: i32) -> (i32, i32) {
    %c0_i32 = arith.constant 0 : i32
    %c0_i32_0 = arith.constant 0 : i32
    return %arg0, %c0_i32 : i32, i32
  }
  func.func @transform_1(%arg0: i32) -> (i32, i32) {
    %c0_i32 = arith.constant 0 : i32
    %c0_i32_0 = arith.constant 0 : i32
    %c0_i32_1 = arith.constant 0 : i32
    return %c0_i32, %c0_i32_0 : i32, i32
  }
  func.func @transform_2(%arg0: i32) -> (i32, i32) {
    %c0_i32 = arith.constant 0 : i32
    %c0_i32_0 = arith.constant 0 : i32
    %c0_i32_1 = arith.constant 0 : i32
    return %c0_i32, %c0_i32_0 : i32, i32
  }
  func.func @transform_3(%arg0: i32) -> (i32, i32) {
    %c0_i32 = arith.constant 0 : i32
    %c0_i32_0 = arith.constant 0 : i32
    %c0_i32_1 = arith.constant 0 : i32
    return %c0_i32, %c0_i32_0 : i32, i32
  }
  func.func @transform_4(%arg0: i32) -> (i32, i32) {
    %c0_i32 = arith.constant 0 : i32
    %c0_i32_0 = arith.constant 0 : i32
    %c0_i32_1 = arith.constant 0 : i32
    return %c0_i32, %c0_i32_0 : i32, i32
  }
  func.func @transform_5(%arg0: i32) -> (i32, i32) {
    %c0_i32 = arith.constant 0 : i32
    %c0_i32_0 = arith.constant 0 : i32
    %c0_i32_1 = arith.constant 0 : i32
    return %c0_i32, %c0_i32_0 : i32, i32
  }
  func.func @transform_6(%arg0: i32) -> (i32, i32) {
    %c0_i32 = arith.constant 0 : i32
    %c0_i32_0 = arith.constant 0 : i32
    %c0_i32_1 = arith.constant 0 : i32
    return %c0_i32, %c0_i32_0 : i32, i32
  }
  func.func @transform_7(%arg0: i32) -> (i32, i32) {
    %c0_i32 = arith.constant 0 : i32
    %c0_i32_0 = arith.constant 0 : i32
    return %arg0, %c0_i32 : i32, i32
  }
}

</mosaic_0001>

<llo_original>
// kernel: tpu_custom_call.1
$region0: #{tpu_custom_call.1}
  #allocation0 [shape = 'u32[]', space=smem, size = 0x4, offset = 0x4, fixed_abs, tag = 'smem constant byte address 0x4 - core index']
  #allocation1 [shape = 'u32[72,128]{1,0:T(1,128)}', space=vmem, size = 0x9000, scoped, tag = 'internal scratch']
  %s0 = inlined_call_operand.hbm [shape: f32[40,4096], index: 0, kind: input, shape index: {}]
  %s1 = inlined_call_operand.hbm [shape: bf16[4096,128], index: 1, kind: input, shape index: {}]
  %s2 = inlined_call_operand.vmem [shape: f32[1,128], index: 2, kind: input, shape index: {}]
  %s3 = inlined_call_operand.vmem [shape: bf16[128,64], index: 3, kind: input, shape index: {}]
  %s4 = inlined_call_operand.vmem [shape: f32[1,64], index: 4, kind: input, shape index: {}]
  %s5 = inlined_call_operand.vmem [shape: bf16[64,128], index: 5, kind: input, shape index: {}]
  %s6 = inlined_call_operand.vmem [shape: f32[1,128], index: 6, kind: input, shape index: {}]
  %s7 = inlined_call_operand.hbm [shape: f32[40,128], index: 7, kind: output, shape index: {}]
  %s8 = sld [smem:[#allocation0]]
  $region69: #{tpu_custom_call.1} parent=0
    _
  %s10 = ssub.s32 1, %s8
  %s11 = scalar_select 0, %s10, %s8
  $region1: #{tpu_custom_call.1} parent=0
    #allocation2 [shape = 'u8[786432]{0}', space=vmem, size = 0xc0000, scoped, tag = 'input window, operand 0']
    #allocation3 [shape = 's32[2]{0}', space=sflag, size = 0x8, scoped, tag = 'scoped memory for tpu_custom_call.1']
    #allocation4 [shape = 's32[2]{0}', space=sflag, size = 0x8, scoped, tag = 'scoped memory for tpu_custom_call.1']
    #allocation5 [shape = 'u8[1048576]{0}', space=vmem, size = 0x100000, scoped, tag = 'input window, operand 1, single buffered']
    #allocation6 [shape = 's32[1]{0}', space=sflag, size = 0x4, scoped, tag = 'scoped memory for tpu_custom_call.1']
    #allocation7 [shape = 'u8[24576]{0}', space=vmem, size = 0x6000, scoped, tag = 'output window, operand 0']
    %12 = vsyncpa [#allocation3], 0
    %s13 = scalar_lea.sflag [#allocation3], 1
    %14 = vsyncpa %s13, 0
    %15 = vsyncpa [#allocation6], 0
    %16 = vsyncpa [#allocation4], 0
    %s17 = scalar_lea.sflag [#allocation4], 1
    %18 = vsyncpa %s17, 0
    loop: start=0, step=1, limit=4
    $region2: #{tpu_custom_call.1} parent=1 // loop_pre_header
      _
    $region3: #{tpu_custom_call.1} parent=1 // loop_header
      %s20 = sphi 0, %s24
      %p21 = scmp.ge.s32.totalorder %s20, 4
      %s30 = sphi 0, %s32
      %s33 = sphi 0, %s30
      %s34 = sphi 0, %s33
      %s50 = sphi 0, %s34
      %s54 = sphi 0, %s54
      %s56 = sphi 0, %s54
      %s57 = sphi 0, %s56
      %s71 = sphi 0, %s57
      %s75 = sphi 0, %s75
      %s77 = sphi 0, %s75
      %s78 = sphi 0, %s77
      %s92 = sphi 0, %s78
      %s96 = sphi 0, %s96
      %s98 = sphi 0, %s96
      %s99 = sphi 0, %s98
      %s113 = sphi 0, %s99
      %s117 = sphi 0, %s117
      %s119 = sphi 0, %s117
      %s120 = sphi 0, %s119
      %s134 = sphi 0, %s120
      %s138 = sphi 0, %s138
      %s140 = sphi 0, %s138
      %s141 = sphi 0, %s140
      %s155 = sphi 0, %s141
      %s159 = sphi 0, %s159
      %s161 = sphi 0, %s159
      %s162 = sphi 0, %s161
      %s176 = sphi 0, %s162
      %s182 = sphi 0, %s184
      %s185 = sphi 0, %s182
      %s186 = sphi 0, %s185
      %s202 = sphi 0, %s186
    $region4: #{tpu_custom_call.1} parent=1 // loop_header_branch
      %23 = sbr.rel (%p21) target = $region8
    $region5: #{tpu_custom_call.1} parent=1 // loop_body
      %s25 = ssub.s32 %s20, 1
      %s26 = ssub.s32 %s20, 2
      %s27 = sadd.s32 %s20, 1
      %s28 = ssub.s32 %s20, %s27
      %p29 = scmp.eq.s32.totalorder %s28, 0
      %s31 = sadd.s32 %s30, 1
      %s32 = scalar_select %p29, %s30, %s31
      %p35 = pneg %p29
      %p36 = scmp.eq.s32.totalorder %s20, 1
      %p37 = por %p35, %p36
      %p38 = scmp.ne.s32.totalorder %s30, %s33
      %p39 = scmp.eq.s32.totalorder %s20, 0
      %p40 = por %p38, %p39
      %p41 = scmp.ne.s32.totalorder %s30, %s33
      %p42 = scmp.eq.s32.totalorder %s25, 1
      %p43 = por %p41, %p42
      %p44 = scmp.ne.s32.totalorder %s33, %s34
      %p45 = scmp.eq.s32.totalorder %s25, 0
      %p46 = por %p44, %p45
      %p47 = scmp.ne.s32.totalorder %s33, %s34
      %p48 = scmp.eq.s32.totalorder %s26, 1
      %p49 = por %p47, %p48
      %p51 = scmp.ne.s32.totalorder %s34, %s50
      %p52 = scmp.eq.s32.totalorder %s26, 0
      %p53 = por %p51, %p52
      %s55 = sadd.s32 %s54, 1
      %p58 = scmp.eq.s32.totalorder %s20, 1
      %p59 = scmp.ne.s32.totalorder %s54, %s56
      %p60 = scmp.eq.s32.totalorder %s20, 0
      %p61 = por %p59, %p60
      %p62 = scmp.ne.s32.totalorder %s54, %s56
      %p63 = scmp.eq.s32.totalorder %s25, 1
      %p64 = por %p62, %p63
      %p65 = scmp.ne.s32.totalorder %s56, %s57
      %p66 = scmp.eq.s32.totalorder %s25, 0
      %p67 = por %p65, %p66
      %p68 = scmp.ne.s32.totalorder %s56, %s57
      %p69 = scmp.eq.s32.totalorder %s26, 1
      %p70 = por %p68, %p69
      %p72 = scmp.ne.s32.totalorder %s57, %s71
      %p73 = scmp.eq.s32.totalorder %s26, 0
      %p74 = por %p72, %p73
      %s76 = sadd.s32 %s75, 1
      %p79 = scmp.eq.s32.totalorder %s20, 1
      %p80 = scmp.ne.s32.totalorder %s75, %s77
      %p81 = scmp.eq.s32.totalorder %s20, 0
      %p82 = por %p80, %p81
      %p83 = scmp.ne.s32.totalorder %s75, %s77
      %p84 = scmp.eq.s32.totalorder %s25, 1
      %p85 = por %p83, %p84
      %p86 = scmp.ne.s32.totalorder %s77, %s78
      %p87 = scmp.eq.s32.totalorder %s25, 0
      %p88 = por %p86, %p87
      %p89 = scmp.ne.s32.totalorder %s77, %s78
      %p90 = scmp.eq.s32.totalorder %s26, 1
      %p91 = por %p89, %p90
      %p93 = scmp.ne.s32.totalorder %s78, %s92
      %p94 = scmp.eq.s32.totalorder %s26, 0
      %p95 = por %p93, %p94
      %s97 = sadd.s32 %s96, 1
      %p100 = scmp.eq.s32.totalorder %s20, 1
      %p101 = scmp.ne.s32.totalorder %s96, %s98
      %p102 = scmp.eq.s32.totalorder %s20, 0
      %p103 = por %p101, %p102
      %p104 = scmp.ne.s32.totalorder %s96, %s98
      %p105 = scmp.eq.s32.totalorder %s25, 1
      %p106 = por %p104, %p105
      %p107 = scmp.ne.s32.totalorder %s98, %s99
      %p108 = scmp.eq.s32.totalorder %s25, 0
      %p109 = por %p107, %p108
      %p110 = scmp.ne.s32.totalorder %s98, %s99
      %p111 = scmp.eq.s32.totalorder %s26, 1
      %p112 = por %p110, %p111
      %p114 = scmp.ne.s32.totalorder %s99, %s113
      %p115 = scmp.eq.s32.totalorder %s26, 0
      %p116 = por %p114, %p115
      %s118 = sadd.s32 %s117, 1
      %p121 = scmp.eq.s32.totalorder %s20, 1
      %p122 = scmp.ne.s32.totalorder %s117, %s119
      %p123 = scmp.eq.s32.totalorder %s20, 0
      %p124 = por %p122, %p123
      %p125 = scmp.ne.s32.totalorder %s117, %s119
      %p126 = scmp.eq.s32.totalorder %s25, 1
      %p127 = por %p125, %p126
      %p128 = scmp.ne.s32.totalorder %s119, %s120
      %p129 = scmp.eq.s32.totalorder %s25, 0
      %p130 = por %p128, %p129
      %p131 = scmp.ne.s32.totalorder %s119, %s120
      %p132 = scmp.eq.s32.totalorder %s26, 1
      %p133 = por %p131, %p132
      %p135 = scmp.ne.s32.totalorder %s120, %s134
      %p136 = scmp.eq.s32.totalorder %s26, 0
      %p137 = por %p135, %p136
      %s139 = sadd.s32 %s138, 1
      %p142 = scmp.eq.s32.totalorder %s20, 1
      %p143 = scmp.ne.s32.totalorder %s138, %s140
      %p144 = scmp.eq.s32.totalorder %s20, 0
      %p145 = por %p143, %p144
      %p146 = scmp.ne.s32.totalorder %s138, %s140
      %p147 = scmp.eq.s32.totalorder %s25, 1
      %p148 = por %p146, %p147
      %p149 = scmp.ne.s32.totalorder %s140, %s141
      %p150 = scmp.eq.s32.totalorder %s25, 0
      %p151 = por %p149, %p150
      %p152 = scmp.ne.s32.totalorder %s140, %s141
      %p153 = scmp.eq.s32.totalorder %s26, 1
      %p154 = por %p152, %p153
      %p156 = scmp.ne.s32.totalorder %s141, %s155
      %p157 = scmp.eq.s32.totalorder %s26, 0
      %p158 = por %p156, %p157
      %s160 = sadd.s32 %s159, 1
      %p163 = scmp.eq.s32.totalorder %s20, 1
      %p164 = scmp.ne.s32.totalorder %s159, %s161
      %p165 = scmp.eq.s32.totalorder %s20, 0
      %p166 = por %p164, %p165
      %p167 = scmp.ne.s32.totalorder %s159, %s161
      %p168 = scmp.eq.s32.totalorder %s25, 1
      %p169 = por %p167, %p168
      %p170 = scmp.ne.s32.totalorder %s161, %s162
      %p171 = scmp.eq.s32.totalorder %s25, 0
      %p172 = por %p170, %p171
      %p173 = scmp.ne.s32.totalorder %s161, %s162
      %p174 = scmp.eq.s32.totalorder %s26, 1
      %p175 = por %p173, %p174
      %p177 = scmp.ne.s32.totalorder %s162, %s176
      %p178 = scmp.eq.s32.totalorder %s26, 0
      %p179 = por %p177, %p178
      %s180 = ssub.s32 %s20, %s27
      %p181 = scmp.eq.s32.totalorder %s180, 0
      %s183 = sadd.s32 %s182, 1
      %s184 = scalar_select %p181, %s182, %s183
      %p187 = pneg %p181
      %p188 = scmp.eq.s32.totalorder %s20, 1
      %p189 = por %p187, %p188
      %p190 = scmp.ne.s32.totalorder %s182, %s185
      %p191 = scmp.eq.s32.totalorder %s20, 0
      %p192 = por %p190, %p191
      %p193 = scmp.ne.s32.totalorder %s182, %s185
      %p194 = scmp.eq.s32.totalorder %s25, 1
      %p195 = por %p193, %p194
      %p196 = scmp.ne.s32.totalorder %s185, %s186
      %p197 = scmp.eq.s32.totalorder %s25, 0
      %p198 = por %p196, %p197
      %p199 = scmp.ne.s32.totalorder %s185, %s186
      %p200 = scmp.eq.s32.totalorder %s26, 1
      %p201 = por %p199, %p200
      %p203 = scmp.ne.s32.totalorder %s186, %s202
      %p204 = scmp.eq.s32.totalorder %s26, 0
      %p205 = por %p203, %p204
      %p206 = scmp.le.s32.totalorder 1, %s20
      %p207 = scmp.lt.s32.totalorder %s20, 3
      %p208 = pnand %p206, %p207
      %p209 = pneg %p208
      // Predicated region
      $region9: #{tpu_custom_call.1} parent=5 // pred_check
        _
      $region10: #{tpu_custom_call.1} parent=5 // pred_check_branch
        %211 = sbr.rel (%p208) target = $region12
      $region11: #{tpu_custom_call.1} parent=5 // pred_region
        %s212 = ssub.s32 %s20, 1
        // Predicated region
        $region13: #{tpu_custom_call.1} parent=11 // pred_check
          %p213 = pneg %p67
        $region14: #{tpu_custom_call.1} parent=11 // pred_check_branch
          %215 = sbr.rel (%p213) target = $region16
        $region15: #{tpu_custom_call.1} parent=11 // pred_region
          %217 = vsyncadd [#allocation6], 0
          %s218 = sshll.u32 %s1, 4
          %s219 = int_to_ptr.hbm [resolvable:$true] %s218
          %s220 = sshll.u32 [#allocation5], 4
          %s221 = int_to_ptr.vmem [resolvable:$true] %s220
          %226 = dma.hbm_to_vmem [thread:$0]  %s219, 32768, %s221, [#allocation6], 64, 64, 4
        $region16: #{tpu_custom_call.1} parent=11 // pred_fallthru
          _
        // Predicated region
        $region17: #{tpu_custom_call.1} parent=11 // pred_check
          %p227 = pneg %p88
        $region18: #{tpu_custom_call.1} parent=11 // pred_check_branch
          %229 = sbr.rel (%p227) target = $region20
        $region19: #{tpu_custom_call.1} parent=11 // pred_region
          _
        $region20: #{tpu_custom_call.1} parent=11 // pred_fallthru
          _
        // Predicated region
        $region21: #{tpu_custom_call.1} parent=11 // pred_check
          %p230 = pneg %p109
        $region22: #{tpu_custom_call.1} parent=11 // pred_check_branch
          %232 = sbr.rel (%p230) target = $region24
        $region23: #{tpu_custom_call.1} parent=11 // pred_region
          _
        $region24: #{tpu_custom_call.1} parent=11 // pred_fallthru
          _
        // Predicated region
        $region25: #{tpu_custom_call.1} parent=11 // pred_check
          %p233 = pneg %p130
        $region26: #{tpu_custom_call.1} parent=11 // pred_check_branch
          %235 = sbr.rel (%p233) target = $region28
        $region27: #{tpu_custom_call.1} parent=11 // pred_region
          _
        $region28: #{tpu_custom_call.1} parent=11 // pred_fallthru
          _
        // Predicated region
        $region29: #{tpu_custom_call.1} parent=11 // pred_check
          %p236 = pneg %p151
        $region30: #{tpu_custom_call.1} parent=11 // pred_check_branch
          %238 = sbr.rel (%p236) target = $region32
        $region31: #{tpu_custom_call.1} parent=11 // pred_region
          _
        $region32: #{tpu_custom_call.1} parent=11 // pred_fallthru
          _
        // Predicated region
        $region33: #{tpu_custom_call.1} parent=11 // pred_check
          %p239 = pneg %p172
        $region34: #{tpu_custom_call.1} parent=11 // pred_check_branch
          %241 = sbr.rel (%p239) target = $region36
        $region35: #{tpu_custom_call.1} parent=11 // pred_region
          _
        $region36: #{tpu_custom_call.1} parent=11 // pred_fallthru
          _
      $region12: #{tpu_custom_call.1} parent=5 // pred_fallthru
        _
      %p242 = scmp.lt.s32.totalorder %s20, 2
      // Predicated region
      $region37: #{tpu_custom_call.1} parent=5 // pred_check
        %p243 = pneg %p242
      $region38: #{tpu_custom_call.1} parent=5 // pred_check_branch
        %245 = sbr.rel (%p243) target = $region40
      $region39: #{tpu_custom_call.1} parent=5 // pred_region
        // Predicated region
        $region41: #{tpu_custom_call.1} parent=39 // pred_check
          %p246 = pneg %p40
        $region42: #{tpu_custom_call.1} parent=39 // pred_check_branch
          %248 = sbr.rel (%p246) target = $region44
        $region43: #{tpu_custom_call.1} parent=39 // pred_region
          %s249 = sand.u32 %s30, 1
          %s250 = scalar_lea.sflag [#allocation3], %s249
          %s251 = sand.u32 %s30, 1
          %s252 = smul.addr %s251, 768
          %s253 = scalar_lea.vmem [#allocation2], %s252
          %s254 = smul.u32 3, %s20
          %s255 = ssub.s32 5, %s254
          %p256 = scmp.lt.s32.totalorder %s255, 3
          %s257 = scalar_select %p256, %s255, 3
          %s258 = smul.u32 8, %s257
          %s259 = smul.u32 %s258, 32
          %s260 = ssub.s32 768, %s259
          %s261 = sshll.u32 %s260, 4
          %262 = vsyncadd %s250, %s261
          %p263 = scmp.ne.s32.totalorder 0, %s259
          %s264 = smul.addr %s254, 32
          %s265 = smul.addr %s264, 8
          %s266 = scalar_lea.hbm %s0, %s265
          %s267 = smul.u32 256, %s257
          %s268 = sshll.u32 %s266, 4
          %s269 = int_to_ptr.hbm [resolvable:$true] %s268
          %s270 = sshll.u32 %s253, 4
          %s271 = int_to_ptr.vmem [resolvable:$true] %s270
          %s272 = sshll.u32 %s267, 4
          %276 = dma.hbm_to_vmem [thread:$0]  (%p263), %s269, %s272, %s271, %s250, 4096, 4096, 256
        $region44: #{tpu_custom_call.1} parent=39 // pred_fallthru
          _
      $region40: #{tpu_custom_call.1} parent=5 // pred_fallthru
        _
      %p277 = scmp.le.s32.totalorder 1, %s20
      %p278 = scmp.lt.s32.totalorder %s20, 3
      %p279 = pnand %p277, %p278
      %p280 = pneg %p279
      // Predicated region
      $region45: #{tpu_custom_call.1} parent=5 // pred_check
        _
      $region46: #{tpu_custom_call.1} parent=5 // pred_check_branch
        %282 = sbr.rel (%p279) target = $region48
      $region47: #{tpu_custom_call.1} parent=5 // pred_region
        %s283 = ssub.s32 %s20, 1
        %s284 = sand.u32 %s33, 1
        %s285 = scalar_lea.sflag [#allocation3], %s284
        %s286 = sand.u32 %s33, 1
        %s287 = smul.addr %s286, 768
        %s288 = scalar_lea.vmem [#allocation2], %s287
        // Predicated region
        $region49: #{tpu_custom_call.1} parent=47 // pred_check
          %p289 = pneg %p46
        $region50: #{tpu_custom_call.1} parent=47 // pred_check_branch
          %291 = sbr.rel (%p289) target = $region52
        $region51: #{tpu_custom_call.1} parent=47 // pred_region
          %293 = dma.done %s285, 12288
        $region52: #{tpu_custom_call.1} parent=47 // pred_fallthru
          _
        // Predicated region
        $region53: #{tpu_custom_call.1} parent=47 // pred_check
          %p294 = pneg %p67
        $region54: #{tpu_custom_call.1} parent=47 // pred_check_branch
          %296 = sbr.rel (%p294) target = $region56
        $region55: #{tpu_custom_call.1} parent=47 // pred_region
          %298 = dma.done [#allocation6], 32768
        $region56: #{tpu_custom_call.1} parent=47 // pred_fallthru
          _
        %s299 = sand.u32 %s33, 1
        %s300 = scalar_lea.sflag [#allocation3], %s299
        %s301 = sand.u32 %s33, 1
        %s302 = smul.addr %s301, 768
        %s303 = scalar_lea.vmem [#allocation2], %s302
        %p304 = pneg %p46
        %p305 = pneg %p43
        %p306 = pneg %p67
        %p307 = pneg %p64
        %p308 = pneg %p88
        %p309 = pneg %p85
        %p310 = pneg %p109
        %p311 = pneg %p106
        %p312 = pneg %p130
        %p313 = pneg %p127
        %p314 = pneg %p151
        %p315 = pneg %p148
        %p316 = pneg %p172
        %p317 = pneg %p169
        %p318 = pneg %p198
        %p319 = pneg %p195
        %s320 = sand.u32 %s185, 1
        %s321 = scalar_lea.sflag [#allocation4], %s320
        %s322 = sand.u32 %s185, 1
        %s323 = smul.addr %s322, 24
        %s324 = scalar_lea.vmem [#allocation7], %s323
        %s325 = smul.u32 3, %s25
        %s326 = ssub.s32 5, %s325
        %p327 = scmp.lt.s32.totalorder %s326, 3
        %s328 = scalar_select %p327, %s326, 3
        %s329 = smul.u32 8, %s328
        %s330 = smul.u32 %s329, 32
        %s331 = smul.u32 3, %s25
        %s332 = ssub.s32 5, %s331
        %p333 = scmp.lt.s32.totalorder %s332, 3
        %s334 = scalar_select %p333, %s332, 3
        %s335 = smul.u32 8, %s334
        %v337 = vld [vmem:[%s288] sm:$0xff]
        %v338 = vld [vmem:[%s288 + $0x8] sm:$0xff]
        %v339 = vld [vmem:[%s288 + $0x10] sm:$0xff]
        %v340 = vld [vmem:[%s288 + $0x18] sm:$0xff]
        %v341 = vld [vmem:[%s288 + $0x20] sm:$0xff]
        %v342 = vld [vmem:[%s288 + $0x28] sm:$0xff]
        %v343 = vld [vmem:[%s288 + $0x30] sm:$0xff]
        %v344 = vld [vmem:[%s288 + $0x38] sm:$0xff]
        %v345 = vld [vmem:[%s288 + $0x40] sm:$0xff]
        %v346 = vld [vmem:[%s288 + $0x48] sm:$0xff]
        %v347 = vld [vmem:[%s288 + $0x50] sm:$0xff]
        %v348 = vld [vmem:[%s288 + $0x58] sm:$0xff]
        %v349 = vld [vmem:[%s288 + $0x60] sm:$0xff]
        %v350 = vld [vmem:[%s288 + $0x68] sm:$0xff]
        %v351 = vld [vmem:[%s288 + $0x70] sm:$0xff]
        %v352 = vld [vmem:[%s288 + $0x78] sm:$0xff]
        %v353 = vld [vmem:[%s288 + $0x80] sm:$0xff]
        %v354 = vld [vmem:[%s288 + $0x88] sm:$0xff]
        %v355 = vld [vmem:[%s288 + $0x90] sm:$0xff]
        %v356 = vld [vmem:[%s288 + $0x98] sm:$0xff]
        %v357 = vld [vmem:[%s288 + $0xa0] sm:$0xff]
        %v358 = vld [vmem:[%s288 + $0xa8] sm:$0xff]
        %v359 = vld [vmem:[%s288 + $0xb0] sm:$0xff]
        %v360 = vld [vmem:[%s288 + $0xb8] sm:$0xff]
        %v361 = vld [vmem:[%s288 + $0xc0] sm:$0xff]
        %v362 = vld [vmem:[%s288 + $0xc8] sm:$0xff]
        %v363 = vld [vmem:[%s288 + $0xd0] sm:$0xff]
        %v364 = vld [vmem:[%s288 + $0xd8] sm:$0xff]
        %v365 = vld [vmem:[%s288 + $0xe0] sm:$0xff]
        %v366 = vld [vmem:[%s288 + $0xe8] sm:$0xff]
        %v367 = vld [vmem:[%s288 + $0xf0] sm:$0xff]
        %v368 = vld [vmem:[%s288 + $0xf8] sm:$0xff]
        %v369 = vld [vmem:[%s288 + $0x100] sm:$0xff]
        %v370 = vld [vmem:[%s288 + $0x108] sm:$0xff]
        %v371 = vld [vmem:[%s288 + $0x110] sm:$0xff]
        %v372 = vld [vmem:[%s288 + $0x118] sm:$0xff]
        %v373 = vld [vmem:[%s288 + $0x120] sm:$0xff]
        %v374 = vld [vmem:[%s288 + $0x128] sm:$0xff]
        %v375 = vld [vmem:[%s288 + $0x130] sm:$0xff]
        %v376 = vld [vmem:[%s288 + $0x138] sm:$0xff]
        %v377 = vld [vmem:[%s288 + $0x140] sm:$0xff]
        %v378 = vld [vmem:[%s288 + $0x148] sm:$0xff]
        %v379 = vld [vmem:[%s288 + $0x150] sm:$0xff]
        %v380 = vld [vmem:[%s288 + $0x158] sm:$0xff]
        %v381 = vld [vmem:[%s288 + $0x160] sm:$0xff]
        %v382 = vld [vmem:[%s288 + $0x168] sm:$0xff]
        %v383 = vld [vmem:[%s288 + $0x170] sm:$0xff]
        %v384 = vld [vmem:[%s288 + $0x178] sm:$0xff]
        %v385 = vld [vmem:[%s288 + $0x180] sm:$0xff]
        %v386 = vld [vmem:[%s288 + $0x188] sm:$0xff]
        %v387 = vld [vmem:[%s288 + $0x190] sm:$0xff]
        %v388 = vld [vmem:[%s288 + $0x198] sm:$0xff]
        %v389 = vld [vmem:[%s288 + $0x1a0] sm:$0xff]
        %v390 = vld [vmem:[%s288 + $0x1a8] sm:$0xff]
        %v391 = vld [vmem:[%s288 + $0x1b0] sm:$0xff]
        %v392 = vld [vmem:[%s288 + $0x1b8] sm:$0xff]
        %v393 = vld [vmem:[%s288 + $0x1c0] sm:$0xff]
        %v394 = vld [vmem:[%s288 + $0x1c8] sm:$0xff]
        %v395 = vld [vmem:[%s288 + $0x1d0] sm:$0xff]
        %v396 = vld [vmem:[%s288 + $0x1d8] sm:$0xff]
        %v397 = vld [vmem:[%s288 + $0x1e0] sm:$0xff]
        %v398 = vld [vmem:[%s288 + $0x1e8] sm:$0xff]
        %v399 = vld [vmem:[%s288 + $0x1f0] sm:$0xff]
        %v400 = vld [vmem:[%s288 + $0x1f8] sm:$0xff]
        %v401 = vld [vmem:[%s288 + $0x200] sm:$0xff]
        %v402 = vld [vmem:[%s288 + $0x208] sm:$0xff]
        %v403 = vld [vmem:[%s288 + $0x210] sm:$0xff]
        %v404 = vld [vmem:[%s288 + $0x218] sm:$0xff]
        %v405 = vld [vmem:[%s288 + $0x220] sm:$0xff]
        %v406 = vld [vmem:[%s288 + $0x228] sm:$0xff]
        %v407 = vld [vmem:[%s288 + $0x230] sm:$0xff]
        %v408 = vld [vmem:[%s288 + $0x238] sm:$0xff]
        %v409 = vld [vmem:[%s288 + $0x240] sm:$0xff]
        %v410 = vld [vmem:[%s288 + $0x248] sm:$0xff]
        %v411 = vld [vmem:[%s288 + $0x250] sm:$0xff]
        %v412 = vld [vmem:[%s288 + $0x258] sm:$0xff]
        %v413 = vld [vmem:[%s288 + $0x260] sm:$0xff]
        %v414 = vld [vmem:[%s288 + $0x268] sm:$0xff]
        %v415 = vld [vmem:[%s288 + $0x270] sm:$0xff]
        %v416 = vld [vmem:[%s288 + $0x278] sm:$0xff]
        %v417 = vld [vmem:[%s288 + $0x280] sm:$0xff]
        %v418 = vld [vmem:[%s288 + $0x288] sm:$0xff]
        %v419 = vld [vmem:[%s288 + $0x290] sm:$0xff]
        %v420 = vld [vmem:[%s288 + $0x298] sm:$0xff]
        %v421 = vld [vmem:[%s288 + $0x2a0] sm:$0xff]
        %v422 = vld [vmem:[%s288 + $0x2a8] sm:$0xff]
        %v423 = vld [vmem:[%s288 + $0x2b0] sm:$0xff]
        %v424 = vld [vmem:[%s288 + $0x2b8] sm:$0xff]
        %v425 = vld [vmem:[%s288 + $0x2c0] sm:$0xff]
        %v426 = vld [vmem:[%s288 + $0x2c8] sm:$0xff]
        %v427 = vld [vmem:[%s288 + $0x2d0] sm:$0xff]
        %v428 = vld [vmem:[%s288 + $0x2d8] sm:$0xff]
        %v429 = vld [vmem:[%s288 + $0x2e0] sm:$0xff]
        %v430 = vld [vmem:[%s288 + $0x2e8] sm:$0xff]
        %v431 = vld [vmem:[%s288 + $0x2f0] sm:$0xff]
        %v432 = vld [vmem:[%s288 + $0x2f8] sm:$0xff]
        %v433 = vpack.c.bf16 %v369, %v337
        %v434 = vpack.c.bf16 %v370, %v338
        %v435 = vpack.c.bf16 %v371, %v339
        %v436 = vpack.c.bf16 %v372, %v340
        %v437 = vpack.c.bf16 %v373, %v341
        %v438 = vpack.c.bf16 %v374, %v342
        %v439 = vpack.c.bf16 %v375, %v343
        %v440 = vpack.c.bf16 %v376, %v344
        %v441 = vpack.c.bf16 %v377, %v345
        %v442 = vpack.c.bf16 %v378, %v346
        %v443 = vpack.c.bf16 %v379, %v347
        %v444 = vpack.c.bf16 %v380, %v348
        %v445 = vpack.c.bf16 %v381, %v349
        %v446 = vpack.c.bf16 %v382, %v350
        %v447 = vpack.c.bf16 %v383, %v351
        %v448 = vpack.c.bf16 %v384, %v352
        %v449 = vpack.c.bf16 %v385, %v353
        %v450 = vpack.c.bf16 %v386, %v354
        %v451 = vpack.c.bf16 %v387, %v355
        %v452 = vpack.c.bf16 %v388, %v356
        %v453 = vpack.c.bf16 %v389, %v357
        %v454 = vpack.c.bf16 %v390, %v358
        %v455 = vpack.c.bf16 %v391, %v359
        %v456 = vpack.c.bf16 %v392, %v360
        %v457 = vpack.c.bf16 %v393, %v361
        %v458 = vpack.c.bf16 %v394, %v362
        %v459 = vpack.c.bf16 %v395, %v363
        %v460 = vpack.c.bf16 %v396, %v364
        %v461 = vpack.c.bf16 %v397, %v365
        %v462 = vpack.c.bf16 %v398, %v366
        %v463 = vpack.c.bf16 %v399, %v367
        %v464 = vpack.c.bf16 %v400, %v368
        %v465 = vpack.c.bf16 %v401, %v401
        %v466 = vpack.c.bf16 %v402, %v402
        %v467 = vpack.c.bf16 %v403, %v403
        %v468 = vpack.c.bf16 %v404, %v404
        %v469 = vpack.c.bf16 %v405, %v405
        %v470 = vpack.c.bf16 %v406, %v406
        %v471 = vpack.c.bf16 %v407, %v407
        %v472 = vpack.c.bf16 %v408, %v408
        %v473 = vpack.c.bf16 %v409, %v409
        %v474 = vpack.c.bf16 %v410, %v410
        %v475 = vpack.c.bf16 %v411, %v411
        %v476 = vpack.c.bf16 %v412, %v412
        %v477 = vpack.c.bf16 %v413, %v413
        %v478 = vpack.c.bf16 %v414, %v414
        %v479 = vpack.c.bf16 %v415, %v415
        %v480 = vpack.c.bf16 %v416, %v416
        %v481 = vpack.c.bf16 %v417, %v417
        %v482 = vpack.c.bf16 %v418, %v418
        %v483 = vpack.c.bf16 %v419, %v419
        %v484 = vpack.c.bf16 %v420, %v420
        %v485 = vpack.c.bf16 %v421, %v421
        %v486 = vpack.c.bf16 %v422, %v422
        %v487 = vpack.c.bf16 %v423, %v423
        %v488 = vpack.c.bf16 %v424, %v424
        %v489 = vpack.c.bf16 %v425, %v425
        %v490 = vpack.c.bf16 %v426, %v426
        %v491 = vpack.c.bf16 %v427, %v427
        %v492 = vpack.c.bf16 %v428, %v428
        %v493 = vpack.c.bf16 %v429, %v429
        %v494 = vpack.c.bf16 %v430, %v430
        %v495 = vpack.c.bf16 %v431, %v431
        %v496 = vpack.c.bf16 %v432, %v432
        %v497 = vld [vmem:[#allocation5] sm:$0xf]
        %v498 = vld [vmem:[#allocation5 + $0x4] sm:$0xf]
        %v499 = vld [vmem:[#allocation5 + $0x8] sm:$0xf]
        %v500 = vld [vmem:[#allocation5 + $0xc] sm:$0xf]
        %v501 = vld [vmem:[#allocation5 + $0x10] sm:$0xf]
        %v502 = vld [vmem:[#allocation5 + $0x14] sm:$0xf]
        %v503 = vld [vmem:[#allocation5 + $0x18] sm:$0xf]
        %v504 = vld [vmem:[#allocation5 + $0x1c] sm:$0xf]
        %v505 = vld [vmem:[#allocation5 + $0x20] sm:$0xf]
        %v506 = vld [vmem:[#allocation5 + $0x24] sm:$0xf]
        %v507 = vld [vmem:[#allocation5 + $0x28] sm:$0xf]
        %v508 = vld [vmem:[#allocation5 + $0x2c] sm:$0xf]
        %v509 = vld [vmem:[#allocation5 + $0x30] sm:$0xf]
        %v510 = vld [vmem:[#allocation5 + $0x34] sm:$0xf]
        %v511 = vld [vmem:[#allocation5 + $0x38] sm:$0xf]
        %v512 = vld [vmem:[#allocation5 + $0x3c] sm:$0xf]
        %v513 = vld [vmem:[#allocation5 + $0x40] sm:$0xf]
        %v514 = vld [vmem:[#allocation5 + $0x44] sm:$0xf]
        %v515 = vld [vmem:[#allocation5 + $0x48] sm:$0xf]
        %v516 = vld [vmem:[#allocation5 + $0x4c] sm:$0xf]
        %v517 = vld [vmem:[#allocation5 + $0x50] sm:$0xf]
        %v518 = vld [vmem:[#allocation5 + $0x54] sm:$0xf]
        %v519 = vld [vmem:[#allocation5 + $0x58] sm:$0xf]
        %v520 = vld [vmem:[#allocation5 + $0x5c] sm:$0xf]
        %v521 = vld [vmem:[#allocation5 + $0x60] sm:$0xf]
        %v522 = vld [vmem:[#allocation5 + $0x64] sm:$0xf]
        %v523 = vld [vmem:[#allocation5 + $0x68] sm:$0xf]
        %v524 = vld [vmem:[#allocation5 + $0x6c] sm:$0xf]
        %v525 = vld [vmem:[#allocation5 + $0x70] sm:$0xf]
        %v526 = vld [vmem:[#allocation5 + $0x74] sm:$0xf]
        %v527 = vld [vmem:[#allocation5 + $0x78] sm:$0xf]
        %v528 = vld [vmem:[#allocation5 + $0x7c] sm:$0xf]
        %v529 = vld [vmem:[#allocation5 + $0x80] sm:$0xf]
        %v530 = vld [vmem:[#allocation5 + $0x84] sm:$0xf]
        %v531 = vld [vmem:[#allocation5 + $0x88] sm:$0xf]
        %v532 = vld [vmem:[#allocation5 + $0x8c] sm:$0xf]
        %v533 = vld [vmem:[#allocation5 + $0x90] sm:$0xf]
        %v534 = vld [vmem:[#allocation5 + $0x94] sm:$0xf]
        %v535 = vld [vmem:[#allocation5 + $0x98] sm:$0xf]
        %v536 = vld [vmem:[#allocation5 + $0x9c] sm:$0xf]
        %v537 = vld [vmem:[#allocation5 + $0xa0] sm:$0xf]
        %v538 = vld [vmem:[#allocation5 + $0xa4] sm:$0xf]
        %v539 = vld [vmem:[#allocation5 + $0xa8] sm:$0xf]
        %v540 = vld [vmem:[#allocation5 + $0xac] sm:$0xf]
        %v541 = vld [vmem:[#allocation5 + $0xb0] sm:$0xf]
        %v542 = vld [vmem:[#allocation5 + $0xb4] sm:$0xf]
        %v543 = vld [vmem:[#allocation5 + $0xb8] sm:$0xf]
        %v544 = vld [vmem:[#allocation5 + $0xbc] sm:$0xf]
        %v545 = vld [vmem:[#allocation5 + $0xc0] sm:$0xf]
        %v546 = vld [vmem:[#allocation5 + $0xc4] sm:$0xf]
        %v547 = vld [vmem:[#allocation5 + $0xc8] sm:$0xf]
        %v548 = vld [vmem:[#allocation5 + $0xcc] sm:$0xf]
        %v549 = vld [vmem:[#allocation5 + $0xd0] sm:$0xf]
        %v550 = vld [vmem:[#allocation5 + $0xd4] sm:$0xf]
        %v551 = vld [vmem:[#allocation5 + $0xd8] sm:$0xf]
        %v552 = vld [vmem:[#allocation5 + $0xdc] sm:$0xf]
        %v553 = vld [vmem:[#allocation5 + $0xe0] sm:$0xf]
        %v554 = vld [vmem:[#allocation5 + $0xe4] sm:$0xf]
        %v555 = vld [vmem:[#allocation5 + $0xe8] sm:$0xf]
        %v556 = vld [vmem:[#allocation5 + $0xec] sm:$0xf]
        %v557 = vld [vmem:[#allocation5 + $0xf0] sm:$0xf]
        %v558 = vld [vmem:[#allocation5 + $0xf4] sm:$0xf]
        %v559 = vld [vmem:[#allocation5 + $0xf8] sm:$0xf]
        %v560 = vld [vmem:[#allocation5 + $0xfc] sm:$0xf]
        %v561 = vld [vmem:[#allocation5 + $0x100] sm:$0xf]
        %v562 = vld [vmem:[#allocation5 + $0x104] sm:$0xf]
        %v563 = vld [vmem:[#allocation5 + $0x108] sm:$0xf]
        %v564 = vld [vmem:[#allocation5 + $0x10c] sm:$0xf]
        %v565 = vld [vmem:[#allocation5 + $0x110] sm:$0xf]
        %v566 = vld [vmem:[#allocation5 + $0x114] sm:$0xf]
        %v567 = vld [vmem:[#allocation5 + $0x118] sm:$0xf]
        %v568 = vld [vmem:[#allocation5 + $0x11c] sm:$0xf]
        %v569 = vld [vmem:[#allocation5 + $0x120] sm:$0xf]
        %v570 = vld [vmem:[#allocation5 + $0x124] sm:$0xf]
        %v571 = vld [vmem:[#allocation5 + $0x128] sm:$0xf]
        %v572 = vld [vmem:[#allocation5 + $0x12c] sm:$0xf]
        %v573 = vld [vmem:[#allocation5 + $0x130] sm:$0xf]
        %v574 = vld [vmem:[#allocation5 + $0x134] sm:$0xf]
        %v575 = vld [vmem:[#allocation5 + $0x138] sm:$0xf]
        %v576 = vld [vmem:[#allocation5 + $0x13c] sm:$0xf]
        %v577 = vld [vmem:[#allocation5 + $0x140] sm:$0xf]
        %v578 = vld [vmem:[#allocation5 + $0x144] sm:$0xf]
        %v579 = vld [vmem:[#allocation5 + $0x148] sm:$0xf]
        %v580 = vld [vmem:[#allocation5 + $0x14c] sm:$0xf]
        %v581 = vld [vmem:[#allocation5 + $0x150] sm:$0xf]
        %v582 = vld [vmem:[#allocation5 + $0x154] sm:$0xf]
        %v583 = vld [vmem:[#allocation5 + $0x158] sm:$0xf]
        %v584 = vld [vmem:[#allocation5 + $0x15c] sm:$0xf]
        %v585 = vld [vmem:[#allocation5 + $0x160] sm:$0xf]
        %v586 = vld [vmem:[#allocation5 + $0x164] sm:$0xf]
        %v587 = vld [vmem:[#allocation5 + $0x168] sm:$0xf]
        %v588 = vld [vmem:[#allocation5 + $0x16c] sm:$0xf]
        %v589 = vld [vmem:[#allocation5 + $0x170] sm:$0xf]
        %v590 = vld [vmem:[#allocation5 + $0x174] sm:$0xf]
        %v591 = vld [vmem:[#allocation5 + $0x178] sm:$0xf]
        %v592 = vld [vmem:[#allocation5 + $0x17c] sm:$0xf]
        %v593 = vld [vmem:[#allocation5 + $0x180] sm:$0xf]
        %v594 = vld [vmem:[#allocation5 + $0x184] sm:$0xf]
        %v595 = vld [vmem:[#allocation5 + $0x188] sm:$0xf]
        %v596 = vld [vmem:[#allocation5 + $0x18c] sm:$0xf]
        %v597 = vld [vmem:[#allocation5 + $0x190] sm:$0xf]
        %v598 = vld [vmem:[#allocation5 + $0x194] sm:$0xf]
        %v599 = vld [vmem:[#allocation5 + $0x198] sm:$0xf]
        %v600 = vld [vmem:[#allocation5 + $0x19c] sm:$0xf]
        %v601 = vld [vmem:[#allocation5 + $0x1a0] sm:$0xf]
        %v602 = vld [vmem:[#allocation5 + $0x1a4] sm:$0xf]
        %v603 = vld [vmem:[#allocation5 + $0x1a8] sm:$0xf]
        %v604 = vld [vmem:[#allocation5 + $0x1ac] sm:$0xf]
        %v605 = vld [vmem:[#allocation5 + $0x1b0] sm:$0xf]
        %v606 = vld [vmem:[#allocation5 + $0x1b4] sm:$0xf]
        %v607 = vld [vmem:[#allocation5 + $0x1b8] sm:$0xf]
        %v608 = vld [vmem:[#allocation5 + $0x1bc] sm:$0xf]
        %v609 = vld [vmem:[#allocation5 + $0x1c0] sm:$0xf]
        %v610 = vld [vmem:[#allocation5 + $0x1c4] sm:$0xf]
        %v611 = vld [vmem:[#allocation5 + $0x1c8] sm:$0xf]
        %v612 = vld [vmem:[#allocation5 + $0x1cc] sm:$0xf]
        %v613 = vld [vmem:[#allocation5 + $0x1d0] sm:$0xf]
        %v614 = vld [vmem:[#allocation5 + $0x1d4] sm:$0xf]
        %v615 = vld [vmem:[#allocation5 + $0x1d8] sm:$0xf]
        %v616 = vld [vmem:[#allocation5 + $0x1dc] sm:$0xf]
        %v617 = vld [vmem:[#allocation5 + $0x1e0] sm:$0xf]
        %v618 = vld [vmem:[#allocation5 + $0x1e4] sm:$0xf]
        %v619 = vld [vmem:[#allocation5 + $0x1e8] sm:$0xf]
        %v620 = vld [vmem:[#allocation5 + $0x1ec] sm:$0xf]
        %v621 = vld [vmem:[#allocation5 + $0x1f0] sm:$0xf]
        %v622 = vld [vmem:[#allocation5 + $0x1f4] sm:$0xf]
        %v623 = vld [vmem:[#allocation5 + $0x1f8] sm:$0xf]
        %v624 = vld [vmem:[#allocation5 + $0x1fc] sm:$0xf]
        %v625 = vld [vmem:[#allocation5 + $0x200] sm:$0xf]
        %v626 = vld [vmem:[#allocation5 + $0x204] sm:$0xf]
        %v627 = vld [vmem:[#allocation5 + $0x208] sm:$0xf]
        %v628 = vld [vmem:[#allocation5 + $0x20c] sm:$0xf]
        %v629 = vld [vmem:[#allocation5 + $0x210] sm:$0xf]
        %v630 = vld [vmem:[#allocation5 + $0x214] sm:$0xf]
        %v631 = vld [vmem:[#allocation5 + $0x218] sm:$0xf]
        %v632 = vld [vmem:[#allocation5 + $0x21c] sm:$0xf]
        %v633 = vld [vmem:[#allocation5 + $0x220] sm:$0xf]
        %v634 = vld [vmem:[#allocation5 + $0x224] sm:$0xf]
        %v635 = vld [vmem:[#allocation5 + $0x228] sm:$0xf]
        %v636 = vld [vmem:[#allocation5 + $0x22c] sm:$0xf]
        %v637 = vld [vmem:[#allocation5 + $0x230] sm:$0xf]
        %v638 = vld [vmem:[#allocation5 + $0x234] sm:$0xf]
        %v639 = vld [vmem:[#allocation5 + $0x238] sm:$0xf]
        %v640 = vld [vmem:[#allocation5 + $0x23c] sm:$0xf]
        %v641 = vld [vmem:[#allocation5 + $0x240] sm:$0xf]
        %v642 = vld [vmem:[#allocation5 + $0x244] sm:$0xf]
        %v643 = vld [vmem:[#allocation5 + $0x248] sm:$0xf]
        %v644 = vld [vmem:[#allocation5 + $0x24c] sm:$0xf]
        %v645 = vld [vmem:[#allocation5 + $0x250] sm:$0xf]
        %v646 = vld [vmem:[#allocation5 + $0x254] sm:$0xf]
        %v647 = vld [vmem:[#allocation5 + $0x258] sm:$0xf]
        %v648 = vld [vmem:[#allocation5 + $0x25c] sm:$0xf]
        %v649 = vld [vmem:[#allocation5 + $0x260] sm:$0xf]
        %v650 = vld [vmem:[#allocation5 + $0x264] sm:$0xf]
        %v651 = vld [vmem:[#allocation5 + $0x268] sm:$0xf]
        %v652 = vld [vmem:[#allocation5 + $0x26c] sm:$0xf]
        %v653 = vld [vmem:[#allocation5 + $0x270] sm:$0xf]
        %v654 = vld [vmem:[#allocation5 + $0x274] sm:$0xf]
        %v655 = vld [vmem:[#allocation5 + $0x278] sm:$0xf]
        %v656 = vld [vmem:[#allocation5 + $0x27c] sm:$0xf]
        %v657 = vld [vmem:[#allocation5 + $0x280] sm:$0xf]
        %v658 = vld [vmem:[#allocation5 + $0x284] sm:$0xf]
        %v659 = vld [vmem:[#allocation5 + $0x288] sm:$0xf]
        %v660 = vld [vmem:[#allocation5 + $0x28c] sm:$0xf]
        %v661 = vld [vmem:[#allocation5 + $0x290] sm:$0xf]
        %v662 = vld [vmem:[#allocation5 + $0x294] sm:$0xf]
        %v663 = vld [vmem:[#allocation5 + $0x298] sm:$0xf]
        %v664 = vld [vmem:[#allocation5 + $0x29c] sm:$0xf]
        %v665 = vld [vmem:[#allocation5 + $0x2a0] sm:$0xf]
        %v666 = vld [vmem:[#allocation5 + $0x2a4] sm:$0xf]
        %v667 = vld [vmem:[#allocation5 + $0x2a8] sm:$0xf]
        %v668 = vld [vmem:[#allocation5 + $0x2ac] sm:$0xf]
        %v669 = vld [vmem:[#allocation5 + $0x2b0] sm:$0xf]
        %v670 = vld [vmem:[#allocation5 + $0x2b4] sm:$0xf]
        %v671 = vld [vmem:[#allocation5 + $0x2b8] sm:$0xf]
        %v672 = vld [vmem:[#allocation5 + $0x2bc] sm:$0xf]
        %v673 = vld [vmem:[#allocation5 + $0x2c0] sm:$0xf]
        %v674 = vld [vmem:[#allocation5 + $0x2c4] sm:$0xf]
        %v675 = vld [vmem:[#allocation5 + $0x2c8] sm:$0xf]
        %v676 = vld [vmem:[#allocation5 + $0x2cc] sm:$0xf]
        %v677 = vld [vmem:[#allocation5 + $0x2d0] sm:$0xf]
        %v678 = vld [vmem:[#allocation5 + $0x2d4] sm:$0xf]
        %v679 = vld [vmem:[#allocation5 + $0x2d8] sm:$0xf]
        %v680 = vld [vmem:[#allocation5 + $0x2dc] sm:$0xf]
        %v681 = vld [vmem:[#allocation5 + $0x2e0] sm:$0xf]
        %v682 = vld [vmem:[#allocation5 + $0x2e4] sm:$0xf]
        %v683 = vld [vmem:[#allocation5 + $0x2e8] sm:$0xf]
        %v684 = vld [vmem:[#allocation5 + $0x2ec] sm:$0xf]
        %v685 = vld [vmem:[#allocation5 + $0x2f0] sm:$0xf]
        %v686 = vld [vmem:[#allocation5 + $0x2f4] sm:$0xf]
        %v687 = vld [vmem:[#allocation5 + $0x2f8] sm:$0xf]
        %v688 = vld [vmem:[#allocation5 + $0x2fc] sm:$0xf]
        %v689 = vld [vmem:[#allocation5 + $0x300] sm:$0xf]
        %v690 = vld [vmem:[#allocation5 + $0x304] sm:$0xf]
        %v691 = vld [vmem:[#allocation5 + $0x308] sm:$0xf]
        %v692 = vld [vmem:[#allocation5 + $0x30c] sm:$0xf]
        %v693 = vld [vmem:[#allocation5 + $0x310] sm:$0xf]
        %v694 = vld [vmem:[#allocation5 + $0x314] sm:$0xf]
        %v695 = vld [vmem:[#allocation5 + $0x318] sm:$0xf]
        %v696 = vld [vmem:[#allocation5 + $0x31c] sm:$0xf]
        %v697 = vld [vmem:[#allocation5 + $0x320] sm:$0xf]
        %v698 = vld [vmem:[#allocation5 + $0x324] sm:$0xf]
        %v699 = vld [vmem:[#allocation5 + $0x328] sm:$0xf]
        %v700 = vld [vmem:[#allocation5 + $0x32c] sm:$0xf]
        %v701 = vld [vmem:[#allocation5 + $0x330] sm:$0xf]
        %v702 = vld [vmem:[#allocation5 + $0x334] sm:$0xf]
        %v703 = vld [vmem:[#allocation5 + $0x338] sm:$0xf]
        %v704 = vld [vmem:[#allocation5 + $0x33c] sm:$0xf]
        %v705 = vld [vmem:[#allocation5 + $0x340] sm:$0xf]
        %v706 = vld [vmem:[#allocation5 + $0x344] sm:$0xf]
        %v707 = vld [vmem:[#allocation5 + $0x348] sm:$0xf]
        %v708 = vld [vmem:[#allocation5 + $0x34c] sm:$0xf]
        %v709 = vld [vmem:[#allocation5 + $0x350] sm:$0xf]
        %v710 = vld [vmem:[#allocation5 + $0x354] sm:$0xf]
        %v711 = vld [vmem:[#allocation5 + $0x358] sm:$0xf]
        %v712 = vld [vmem:[#allocation5 + $0x35c] sm:$0xf]
        %v713 = vld [vmem:[#allocation5 + $0x360] sm:$0xf]
        %v714 = vld [vmem:[#allocation5 + $0x364] sm:$0xf]
        %v715 = vld [vmem:[#allocation5 + $0x368] sm:$0xf]
        %v716 = vld [vmem:[#allocation5 + $0x36c] sm:$0xf]
        %v717 = vld [vmem:[#allocation5 + $0x370] sm:$0xf]
        %v718 = vld [vmem:[#allocation5 + $0x374] sm:$0xf]
        %v719 = vld [vmem:[#allocation5 + $0x378] sm:$0xf]
        %v720 = vld [vmem:[#allocation5 + $0x37c] sm:$0xf]
        %v721 = vld [vmem:[#allocation5 + $0x380] sm:$0xf]
        %v722 = vld [vmem:[#allocation5 + $0x384] sm:$0xf]
        %v723 = vld [vmem:[#allocation5 + $0x388] sm:$0xf]
        %v724 = vld [vmem:[#allocation5 + $0x38c] sm:$0xf]
        %v725 = vld [vmem:[#allocation5 + $0x390] sm:$0xf]
        %v726 = vld [vmem:[#allocation5 + $0x394] sm:$0xf]
        %v727 = vld [vmem:[#allocation5 + $0x398] sm:$0xf]
        %v728 = vld [vmem:[#allocation5 + $0x39c] sm:$0xf]
        %v729 = vld [vmem:[#allocation5 + $0x3a0] sm:$0xf]
        %v730 = vld [vmem:[#allocation5 + $0x3a4] sm:$0xf]
        %v731 = vld [vmem:[#allocation5 + $0x3a8] sm:$0xf]
        %v732 = vld [vmem:[#allocation5 + $0x3ac] sm:$0xf]
        %v733 = vld [vmem:[#allocation5 + $0x3b0] sm:$0xf]
        %v734 = vld [vmem:[#allocation5 + $0x3b4] sm:$0xf]
        %v735 = vld [vmem:[#allocation5 + $0x3b8] sm:$0xf]
        %v736 = vld [vmem:[#allocation5 + $0x3bc] sm:$0xf]
        %v737 = vld [vmem:[#allocation5 + $0x3c0] sm:$0xf]
        %v738 = vld [vmem:[#allocation5 + $0x3c4] sm:$0xf]
        %v739 = vld [vmem:[#allocation5 + $0x3c8] sm:$0xf]
        %v740 = vld [vmem:[#allocation5 + $0x3cc] sm:$0xf]
        %v741 = vld [vmem:[#allocation5 + $0x3d0] sm:$0xf]
        %v742 = vld [vmem:[#allocation5 + $0x3d4] sm:$0xf]
        %v743 = vld [vmem:[#allocation5 + $0x3d8] sm:$0xf]
        %v744 = vld [vmem:[#allocation5 + $0x3dc] sm:$0xf]
        %v745 = vld [vmem:[#allocation5 + $0x3e0] sm:$0xf]
        %v746 = vld [vmem:[#allocation5 + $0x3e4] sm:$0xf]
        %v747 = vld [vmem:[#allocation5 + $0x3e8] sm:$0xf]
        %v748 = vld [vmem:[#allocation5 + $0x3ec] sm:$0xf]
        %v749 = vld [vmem:[#allocation5 + $0x3f0] sm:$0xf]
        %v750 = vld [vmem:[#allocation5 + $0x3f4] sm:$0xf]
        %v751 = vld [vmem:[#allocation5 + $0x3f8] sm:$0xf]
        %v752 = vld [vmem:[#allocation5 + $0x3fc] sm:$0xf]
        %v753 = vld [vmem:[#allocation5 + $0x400] sm:$0xf]
        %v754 = vld [vmem:[#allocation5 + $0x404] sm:$0xf]
        %v755 = vld [vmem:[#allocation5 + $0x408] sm:$0xf]
        %v756 = vld [vmem:[#allocation5 + $0x40c] sm:$0xf]
        %v757 = vld [vmem:[#allocation5 + $0x410] sm:$0xf]
        %v758 = vld [vmem:[#allocation5 + $0x414] sm:$0xf]
        %v759 = vld [vmem:[#allocation5 + $0x418] sm:$0xf]
        %v760 = vld [vmem:[#allocation5 + $0x41c] sm:$0xf]
        %v761 = vld [vmem:[#allocation5 + $0x420] sm:$0xf]
        %v762 = vld [vmem:[#allocation5 + $0x424] sm:$0xf]
        %v763 = vld [vmem:[#allocation5 + $0x428] sm:$0xf]
        %v764 = vld [vmem:[#allocation5 + $0x42c] sm:$0xf]
        %v765 = vld [vmem:[#allocation5 + $0x430] sm:$0xf]
        %v766 = vld [vmem:[#allocation5 + $0x434] sm:$0xf]
        %v767 = vld [vmem:[#allocation5 + $0x438] sm:$0xf]
        %v768 = vld [vmem:[#allocation5 + $0x43c] sm:$0xf]
        %v769 = vld [vmem:[#allocation5 + $0x440] sm:$0xf]
        %v770 = vld [vmem:[#allocation5 + $0x444] sm:$0xf]
        %v771 = vld [vmem:[#allocation5 + $0x448] sm:$0xf]
        %v772 = vld [vmem:[#allocation5 + $0x44c] sm:$0xf]
        %v773 = vld [vmem:[#allocation5 + $0x450] sm:$0xf]
        %v774 = vld [vmem:[#allocation5 + $0x454] sm:$0xf]
        %v775 = vld [vmem:[#allocation5 + $0x458] sm:$0xf]
        %v776 = vld [vmem:[#allocation5 + $0x45c] sm:$0xf]
        %v777 = vld [vmem:[#allocation5 + $0x460] sm:$0xf]
        %v778 = vld [vmem:[#allocation5 + $0x464] sm:$0xf]
        %v779 = vld [vmem:[#allocation5 + $0x468] sm:$0xf]
        %v780 = vld [vmem:[#allocation5 + $0x46c] sm:$0xf]
        %v781 = vld [vmem:[#allocation5 + $0x470] sm:$0xf]
        %v782 = vld [vmem:[#allocation5 + $0x474] sm:$0xf]
        %v783 = vld [vmem:[#allocation5 + $0x478] sm:$0xf]
        %v784 = vld [vmem:[#allocation5 + $0x47c] sm:$0xf]
        %v785 = vld [vmem:[#allocation5 + $0x480] sm:$0xf]
        %v786 = vld [vmem:[#allocation5 + $0x484] sm:$0xf]
        %v787 = vld [vmem:[#allocation5 + $0x488] sm:$0xf]
        %v788 = vld [vmem:[#allocation5 + $0x48c] sm:$0xf]
        %v789 = vld [vmem:[#allocation5 + $0x490] sm:$0xf]
        %v790 = vld [vmem:[#allocation5 + $0x494] sm:$0xf]
        %v791 = vld [vmem:[#allocation5 + $0x498] sm:$0xf]
        %v792 = vld [vmem:[#allocation5 + $0x49c] sm:$0xf]
        %v793 = vld [vmem:[#allocation5 + $0x4a0] sm:$0xf]
        %v794 = vld [vmem:[#allocation5 + $0x4a4] sm:$0xf]
        %v795 = vld [vmem:[#allocation5 + $0x4a8] sm:$0xf]
        %v796 = vld [vmem:[#allocation5 + $0x4ac] sm:$0xf]
        %v797 = vld [vmem:[#allocation5 + $0x4b0] sm:$0xf]
        %v798 = vld [vmem:[#allocation5 + $0x4b4] sm:$0xf]
        %v799 = vld [vmem:[#allocation5 + $0x4b8] sm:$0xf]
        %v800 = vld [vmem:[#allocation5 + $0x4bc] sm:$0xf]
        %v801 = vld [vmem:[#allocation5 + $0x4c0] sm:$0xf]
        %v802 = vld [vmem:[#allocation5 + $0x4c4] sm:$0xf]
        %v803 = vld [vmem:[#allocation5 + $0x4c8] sm:$0xf]
        %v804 = vld [vmem:[#allocation5 + $0x4cc] sm:$0xf]
        %v805 = vld [vmem:[#allocation5 + $0x4d0] sm:$0xf]
        %v806 = vld [vmem:[#allocation5 + $0x4d4] sm:$0xf]
        %v807 = vld [vmem:[#allocation5 + $0x4d8] sm:$0xf]
        %v808 = vld [vmem:[#allocation5 + $0x4dc] sm:$0xf]
        %v809 = vld [vmem:[#allocation5 + $0x4e0] sm:$0xf]
        %v810 = vld [vmem:[#allocation5 + $0x4e4] sm:$0xf]
        %v811 = vld [vmem:[#allocation5 + $0x4e8] sm:$0xf]
        %v812 = vld [vmem:[#allocation5 + $0x4ec] sm:$0xf]
        %v813 = vld [vmem:[#allocation5 + $0x4f0] sm:$0xf]
        %v814 = vld [vmem:[#allocation5 + $0x4f4] sm:$0xf]
        %v815 = vld [vmem:[#allocation5 + $0x4f8] sm:$0xf]
        %v816 = vld [vmem:[#allocation5 + $0x4fc] sm:$0xf]
        %v817 = vld [vmem:[#allocation5 + $0x500] sm:$0xf]
        %v818 = vld [vmem:[#allocation5 + $0x504] sm:$0xf]
        %v819 = vld [vmem:[#allocation5 + $0x508] sm:$0xf]
        %v820 = vld [vmem:[#allocation5 + $0x50c] sm:$0xf]
        %v821 = vld [vmem:[#allocation5 + $0x510] sm:$0xf]
        %v822 = vld [vmem:[#allocation5 + $0x514] sm:$0xf]
        %v823 = vld [vmem:[#allocation5 + $0x518] sm:$0xf]
        %v824 = vld [vmem:[#allocation5 + $0x51c] sm:$0xf]
        %v825 = vld [vmem:[#allocation5 + $0x520] sm:$0xf]
        %v826 = vld [vmem:[#allocation5 + $0x524] sm:$0xf]
        %v827 = vld [vmem:[#allocation5 + $0x528] sm:$0xf]
        %v828 = vld [vmem:[#allocation5 + $0x52c] sm:$0xf]
        %v829 = vld [vmem:[#allocation5 + $0x530] sm:$0xf]
        %v830 = vld [vmem:[#allocation5 + $0x534] sm:$0xf]
        %v831 = vld [vmem:[#allocation5 + $0x538] sm:$0xf]
        %v832 = vld [vmem:[#allocation5 + $0x53c] sm:$0xf]
        %v833 = vld [vmem:[#allocation5 + $0x540] sm:$0xf]
        %v834 = vld [vmem:[#allocation5 + $0x544] sm:$0xf]
        %v835 = vld [vmem:[#allocation5 + $0x548] sm:$0xf]
        %v836 = vld [vmem:[#allocation5 + $0x54c] sm:$0xf]
        %v837 = vld [vmem:[#allocation5 + $0x550] sm:$0xf]
        %v838 = vld [vmem:[#allocation5 + $0x554] sm:$0xf]
        %v839 = vld [vmem:[#allocation5 + $0x558] sm:$0xf]
        %v840 = vld [vmem:[#allocation5 + $0x55c] sm:$0xf]
        %v841 = vld [vmem:[#allocation5 + $0x560] sm:$0xf]
        %v842 = vld [vmem:[#allocation5 + $0x564] sm:$0xf]
        %v843 = vld [vmem:[#allocation5 + $0x568] sm:$0xf]
        %v844 = vld [vmem:[#allocation5 + $0x56c] sm:$0xf]
        %v845 = vld [vmem:[#allocation5 + $0x570] sm:$0xf]
        %v846 = vld [vmem:[#allocation5 + $0x574] sm:$0xf]
        %v847 = vld [vmem:[#allocation5 + $0x578] sm:$0xf]
        %v848 = vld [vmem:[#allocation5 + $0x57c] sm:$0xf]
        %v849 = vld [vmem:[#allocation5 + $0x580] sm:$0xf]
        %v850 = vld [vmem:[#allocation5 + $0x584] sm:$0xf]
        %v851 = vld [vmem:[#allocation5 + $0x588] sm:$0xf]
        %v852 = vld [vmem:[#allocation5 + $0x58c] sm:$0xf]
        %v853 = vld [vmem:[#allocation5 + $0x590] sm:$0xf]
        %v854 = vld [vmem:[#allocation5 + $0x594] sm:$0xf]
        %v855 = vld [vmem:[#allocation5 + $0x598] sm:$0xf]
        %v856 = vld [vmem:[#allocation5 + $0x59c] sm:$0xf]
        %v857 = vld [vmem:[#allocation5 + $0x5a0] sm:$0xf]
        %v858 = vld [vmem:[#allocation5 + $0x5a4] sm:$0xf]
        %v859 = vld [vmem:[#allocation5 + $0x5a8] sm:$0xf]
        %v860 = vld [vmem:[#allocation5 + $0x5ac] sm:$0xf]
        %v861 = vld [vmem:[#allocation5 + $0x5b0] sm:$0xf]
        %v862 = vld [vmem:[#allocation5 + $0x5b4] sm:$0xf]
        %v863 = vld [vmem:[#allocation5 + $0x5b8] sm:$0xf]
        %v864 = vld [vmem:[#allocation5 + $0x5bc] sm:$0xf]
        %v865 = vld [vmem:[#allocation5 + $0x5c0] sm:$0xf]
        %v866 = vld [vmem:[#allocation5 + $0x5c4] sm:$0xf]
        %v867 = vld [vmem:[#allocation5 + $0x5c8] sm:$0xf]
        %v868 = vld [vmem:[#allocation5 + $0x5cc] sm:$0xf]
        %v869 = vld [vmem:[#allocation5 + $0x5d0] sm:$0xf]
        %v870 = vld [vmem:[#allocation5 + $0x5d4] sm:$0xf]
        %v871 = vld [vmem:[#allocation5 + $0x5d8] sm:$0xf]
        %v872 = vld [vmem:[#allocation5 + $0x5dc] sm:$0xf]
        %v873 = vld [vmem:[#allocation5 + $0x5e0] sm:$0xf]
        %v874 = vld [vmem:[#allocation5 + $0x5e4] sm:$0xf]
        %v875 = vld [vmem:[#allocation5 + $0x5e8] sm:$0xf]
        %v876 = vld [vmem:[#allocation5 + $0x5ec] sm:$0xf]
        %v877 = vld [vmem:[#allocation5 + $0x5f0] sm:$0xf]
        %v878 = vld [vmem:[#allocation5 + $0x5f4] sm:$0xf]
        %v879 = vld [vmem:[#allocation5 + $0x5f8] sm:$0xf]
        %v880 = vld [vmem:[#allocation5 + $0x5fc] sm:$0xf]
        %v881 = vld [vmem:[#allocation5 + $0x600] sm:$0xf]
        %v882 = vld [vmem:[#allocation5 + $0x604] sm:$0xf]
        %v883 = vld [vmem:[#allocation5 + $0x608] sm:$0xf]
        %v884 = vld [vmem:[#allocation5 + $0x60c] sm:$0xf]
        %v885 = vld [vmem:[#allocation5 + $0x610] sm:$0xf]
        %v886 = vld [vmem:[#allocation5 + $0x614] sm:$0xf]
        %v887 = vld [vmem:[#allocation5 + $0x618] sm:$0xf]
        %v888 = vld [vmem:[#allocation5 + $0x61c] sm:$0xf]
        %v889 = vld [vmem:[#allocation5 + $0x620] sm:$0xf]
        %v890 = vld [vmem:[#allocation5 + $0x624] sm:$0xf]
        %v891 = vld [vmem:[#allocation5 + $0x628] sm:$0xf]
        %v892 = vld [vmem:[#allocation5 + $0x62c] sm:$0xf]
        %v893 = vld [vmem:[#allocation5 + $0x630] sm:$0xf]
        %v894 = vld [vmem:[#allocation5 + $0x634] sm:$0xf]
        %v895 = vld [vmem:[#allocation5 + $0x638] sm:$0xf]
        %v896 = vld [vmem:[#allocation5 + $0x63c] sm:$0xf]
        %v897 = vld [vmem:[#allocation5 + $0x640] sm:$0xf]
        %v898 = vld [vmem:[#allocation5 + $0x644] sm:$0xf]
        %v899 = vld [vmem:[#allocation5 + $0x648] sm:$0xf]
        %v900 = vld [vmem:[#allocation5 + $0x64c] sm:$0xf]
        %v901 = vld [vmem:[#allocation5 + $0x650] sm:$0xf]
        %v902 = vld [vmem:[#allocation5 + $0x654] sm:$0xf]
        %v903 = vld [vmem:[#allocation5 + $0x658] sm:$0xf]
        %v904 = vld [vmem:[#allocation5 + $0x65c] sm:$0xf]
        %v905 = vld [vmem:[#allocation5 + $0x660] sm:$0xf]
        %v906 = vld [vmem:[#allocation5 + $0x664] sm:$0xf]
        %v907 = vld [vmem:[#allocation5 + $0x668] sm:$0xf]
        %v908 = vld [vmem:[#allocation5 + $0x66c] sm:$0xf]
        %v909 = vld [vmem:[#allocation5 + $0x670] sm:$0xf]
        %v910 = vld [vmem:[#allocation5 + $0x674] sm:$0xf]
        %v911 = vld [vmem:[#allocation5 + $0x678] sm:$0xf]
        %v912 = vld [vmem:[#allocation5 + $0x67c] sm:$0xf]
        %v913 = vld [vmem:[#allocation5 + $0x680] sm:$0xf]
        %v914 = vld [vmem:[#allocation5 + $0x684] sm:$0xf]
        %v915 = vld [vmem:[#allocation5 + $0x688] sm:$0xf]
        %v916 = vld [vmem:[#allocation5 + $0x68c] sm:$0xf]
        %v917 = vld [vmem:[#allocation5 + $0x690] sm:$0xf]
        %v918 = vld [vmem:[#allocation5 + $0x694] sm:$0xf]
        %v919 = vld [vmem:[#allocation5 + $0x698] sm:$0xf]
        %v920 = vld [vmem:[#allocation5 + $0x69c] sm:$0xf]
        %v921 = vld [vmem:[#allocation5 + $0x6a0] sm:$0xf]
        %v922 = vld [vmem:[#allocation5 + $0x6a4] sm:$0xf]
        %v923 = vld [vmem:[#allocation5 + $0x6a8] sm:$0xf]
        %v924 = vld [vmem:[#allocation5 + $0x6ac] sm:$0xf]
        %v925 = vld [vmem:[#allocation5 + $0x6b0] sm:$0xf]
        %v926 = vld [vmem:[#allocation5 + $0x6b4] sm:$0xf]
        %v927 = vld [vmem:[#allocation5 + $0x6b8] sm:$0xf]
        %v928 = vld [vmem:[#allocation5 + $0x6bc] sm:$0xf]
        %v929 = vld [vmem:[#allocation5 + $0x6c0] sm:$0xf]
        %v930 = vld [vmem:[#allocation5 + $0x6c4] sm:$0xf]
        %v931 = vld [vmem:[#allocation5 + $0x6c8] sm:$0xf]
        %v932 = vld [vmem:[#allocation5 + $0x6cc] sm:$0xf]
        %v933 = vld [vmem:[#allocation5 + $0x6d0] sm:$0xf]
        %v934 = vld [vmem:[#allocation5 + $0x6d4] sm:$0xf]
        %v935 = vld [vmem:[#allocation5 + $0x6d8] sm:$0xf]
        %v936 = vld [vmem:[#allocation5 + $0x6dc] sm:$0xf]
        %v937 = vld [vmem:[#allocation5 + $0x6e0] sm:$0xf]
        %v938 = vld [vmem:[#allocation5 + $0x6e4] sm:$0xf]
        %v939 = vld [vmem:[#allocation5 + $0x6e8] sm:$0xf]
        %v940 = vld [vmem:[#allocation5 + $0x6ec] sm:$0xf]
        %v941 = vld [vmem:[#allocation5 + $0x6f0] sm:$0xf]
        %v942 = vld [vmem:[#allocation5 + $0x6f4] sm:$0xf]
        %v943 = vld [vmem:[#allocation5 + $0x6f8] sm:$0xf]
        %v944 = vld [vmem:[#allocation5 + $0x6fc] sm:$0xf]
        %v945 = vld [vmem:[#allocation5 + $0x700] sm:$0xf]
        %v946 = vld [vmem:[#allocation5 + $0x704] sm:$0xf]
        %v947 = vld [vmem:[#allocation5 + $0x708] sm:$0xf]
        %v948 = vld [vmem:[#allocation5 + $0x70c] sm:$0xf]
        %v949 = vld [vmem:[#allocation5 + $0x710] sm:$0xf]
        %v950 = vld [vmem:[#allocation5 + $0x714] sm:$0xf]
        %v951 = vld [vmem:[#allocation5 + $0x718] sm:$0xf]
        %v952 = vld [vmem:[#allocation5 + $0x71c] sm:$0xf]
        %v953 = vld [vmem:[#allocation5 + $0x720] sm:$0xf]
        %v954 = vld [vmem:[#allocation5 + $0x724] sm:$0xf]
        %v955 = vld [vmem:[#allocation5 + $0x728] sm:$0xf]
        %v956 = vld [vmem:[#allocation5 + $0x72c] sm:$0xf]
        %v957 = vld [vmem:[#allocation5 + $0x730] sm:$0xf]
        %v958 = vld [vmem:[#allocation5 + $0x734] sm:$0xf]
        %v959 = vld [vmem:[#allocation5 + $0x738] sm:$0xf]
        %v960 = vld [vmem:[#allocation5 + $0x73c] sm:$0xf]
        %v961 = vld [vmem:[#allocation5 + $0x740] sm:$0xf]
        %v962 = vld [vmem:[#allocation5 + $0x744] sm:$0xf]
        %v963 = vld [vmem:[#allocation5 + $0x748] sm:$0xf]
        %v964 = vld [vmem:[#allocation5 + $0x74c] sm:$0xf]
        %v965 = vld [vmem:[#allocation5 + $0x750] sm:$0xf]
        %v966 = vld [vmem:[#allocation5 + $0x754] sm:$0xf]
        %v967 = vld [vmem:[#allocation5 + $0x758] sm:$0xf]
        %v968 = vld [vmem:[#allocation5 + $0x75c] sm:$0xf]
        %v969 = vld [vmem:[#allocation5 + $0x760] sm:$0xf]
        %v970 = vld [vmem:[#allocation5 + $0x764] sm:$0xf]
        %v971 = vld [vmem:[#allocation5 + $0x768] sm:$0xf]
        %v972 = vld [vmem:[#allocation5 + $0x76c] sm:$0xf]
        %v973 = vld [vmem:[#allocation5 + $0x770] sm:$0xf]
        %v974 = vld [vmem:[#allocation5 + $0x774] sm:$0xf]
        %v975 = vld [vmem:[#allocation5 + $0x778] sm:$0xf]
        %v976 = vld [vmem:[#allocation5 + $0x77c] sm:$0xf]
        %v977 = vld [vmem:[#allocation5 + $0x780] sm:$0xf]
        %v978 = vld [vmem:[#allocation5 + $0x784] sm:$0xf]
        %v979 = vld [vmem:[#allocation5 + $0x788] sm:$0xf]
        %v980 = vld [vmem:[#allocation5 + $0x78c] sm:$0xf]
        %v981 = vld [vmem:[#allocation5 + $0x790] sm:$0xf]
        %v982 = vld [vmem:[#allocation5 + $0x794] sm:$0xf]
        %v983 = vld [vmem:[#allocation5 + $0x798] sm:$0xf]
        %v984 = vld [vmem:[#allocation5 + $0x79c] sm:$0xf]
        %v985 = vld [vmem:[#allocation5 + $0x7a0] sm:$0xf]
        %v986 = vld [vmem:[#allocation5 + $0x7a4] sm:$0xf]
        %v987 = vld [vmem:[#allocation5 + $0x7a8] sm:$0xf]
        %v988 = vld [vmem:[#allocation5 + $0x7ac] sm:$0xf]
        %v989 = vld [vmem:[#allocation5 + $0x7b0] sm:$0xf]
        %v990 = vld [vmem:[#allocation5 + $0x7b4] sm:$0xf]
        %v991 = vld [vmem:[#allocation5 + $0x7b8] sm:$0xf]
        %v992 = vld [vmem:[#allocation5 + $0x7bc] sm:$0xf]
        %v993 = vld [vmem:[#allocation5 + $0x7c0] sm:$0xf]
        %v994 = vld [vmem:[#allocation5 + $0x7c4] sm:$0xf]
        %v995 = vld [vmem:[#allocation5 + $0x7c8] sm:$0xf]
        %v996 = vld [vmem:[#allocation5 + $0x7cc] sm:$0xf]
        %v997 = vld [vmem:[#allocation5 + $0x7d0] sm:$0xf]
        %v998 = vld [vmem:[#allocation5 + $0x7d4] sm:$0xf]
        %v999 = vld [vmem:[#allocation5 + $0x7d8] sm:$0xf]
        %v1000 = vld [vmem:[#allocation5 + $0x7dc] sm:$0xf]
        %v1001 = vld [vmem:[#allocation5 + $0x7e0] sm:$0xf]
        %v1002 = vld [vmem:[#allocation5 + $0x7e4] sm:$0xf]
        %v1003 = vld [vmem:[#allocation5 + $0x7e8] sm:$0xf]
        %v1004 = vld [vmem:[#allocation5 + $0x7ec] sm:$0xf]
        %v1005 = vld [vmem:[#allocation5 + $0x7f0] sm:$0xf]
        %v1006 = vld [vmem:[#allocation5 + $0x7f4] sm:$0xf]
        %v1007 = vld [vmem:[#allocation5 + $0x7f8] sm:$0xf]
        %v1008 = vld [vmem:[#allocation5 + $0x7fc] sm:$0xf]
        %v1009 = vld [vmem:[%s2] sm:$0x1]
        %v1011 = vperm.slane %v1009, 0
        %v1525 = vunpack.c.l.b16 %v497
        %v1526 = vunpack.c.l.b16 %v498
        %v1527 = vunpack.c.l.b16 %v499
        %v1528 = vunpack.c.l.b16 %v500
        %v1529 = vunpack.c.l.b16 %v501
        %v1530 = vunpack.c.l.b16 %v502
        %v1531 = vunpack.c.l.b16 %v503
        %v1532 = vunpack.c.l.b16 %v504
        %v1533 = vunpack.c.l.b16 %v505
        %v1534 = vunpack.c.l.b16 %v506
        %v1535 = vunpack.c.l.b16 %v507
        %v1536 = vunpack.c.l.b16 %v508
        %v1537 = vunpack.c.l.b16 %v509
        %v1538 = vunpack.c.l.b16 %v510
        %v1539 = vunpack.c.l.b16 %v511
        %v1540 = vunpack.c.l.b16 %v512
        %v1541 = vunpack.c.l.b16 %v513
        %v1542 = vunpack.c.l.b16 %v514
        %v1543 = vunpack.c.l.b16 %v515
        %v1544 = vunpack.c.l.b16 %v516
        %v1545 = vunpack.c.l.b16 %v517
        %v1546 = vunpack.c.l.b16 %v518
        %v1547 = vunpack.c.l.b16 %v519
        %v1548 = vunpack.c.l.b16 %v520
        %v1549 = vunpack.c.l.b16 %v521
        %v1550 = vunpack.c.l.b16 %v522
        %v1551 = vunpack.c.l.b16 %v523
        %v1552 = vunpack.c.l.b16 %v524
        %v1553 = vunpack.c.l.b16 %v525
        %v1554 = vunpack.c.l.b16 %v526
        %v1555 = vunpack.c.l.b16 %v527
        %v1556 = vunpack.c.l.b16 %v528
        %v1557 = vunpack.c.l.b16 %v529
        %v1558 = vunpack.c.l.b16 %v530
        %v1559 = vunpack.c.l.b16 %v531
        %v1560 = vunpack.c.l.b16 %v532
        %v1561 = vunpack.c.l.b16 %v533
        %v1562 = vunpack.c.l.b16 %v534
        %v1563 = vunpack.c.l.b16 %v535
        %v1564 = vunpack.c.l.b16 %v536
        %v1565 = vunpack.c.l.b16 %v537
        %v1566 = vunpack.c.l.b16 %v538
        %v1567 = vunpack.c.l.b16 %v539
        %v1568 = vunpack.c.l.b16 %v540
        %v1569 = vunpack.c.l.b16 %v541
        %v1570 = vunpack.c.l.b16 %v542
        %v1571 = vunpack.c.l.b16 %v543
        %v1572 = vunpack.c.l.b16 %v544
        %v1573 = vunpack.c.l.b16 %v545
        %v1574 = vunpack.c.l.b16 %v546
        %v1575 = vunpack.c.l.b16 %v547
        %v1576 = vunpack.c.l.b16 %v548
        %v1577 = vunpack.c.l.b16 %v549
        %v1578 = vunpack.c.l.b16 %v550
        %v1579 = vunpack.c.l.b16 %v551
        %v1580 = vunpack.c.l.b16 %v552
        %v1581 = vunpack.c.l.b16 %v553
        %v1582 = vunpack.c.l.b16 %v554
        %v1583 = vunpack.c.l.b16 %v555
        %v1584 = vunpack.c.l.b16 %v556
        %v1585 = vunpack.c.l.b16 %v557
        %v1586 = vunpack.c.l.b16 %v558
        %v1587 = vunpack.c.l.b16 %v559
        %v1588 = vunpack.c.l.b16 %v560
        %v1589 = vunpack.c.l.b16 %v561
        %v1590 = vunpack.c.l.b16 %v562
        %v1591 = vunpack.c.l.b16 %v563
        %v1592 = vunpack.c.l.b16 %v564
        %v1593 = vunpack.c.l.b16 %v565
        %v1594 = vunpack.c.l.b16 %v566
        %v1595 = vunpack.c.l.b16 %v567
        %v1596 = vunpack.c.l.b16 %v568
        %v1597 = vunpack.c.l.b16 %v569
        %v1598 = vunpack.c.l.b16 %v570
        %v1599 = vunpack.c.l.b16 %v571
        %v1600 = vunpack.c.l.b16 %v572
        %v1601 = vunpack.c.l.b16 %v573
        %v1602 = vunpack.c.l.b16 %v574
        %v1603 = vunpack.c.l.b16 %v575
        %v1604 = vunpack.c.l.b16 %v576
        %v1605 = vunpack.c.l.b16 %v577
        %v1606 = vunpack.c.l.b16 %v578
        %v1607 = vunpack.c.l.b16 %v579
        %v1608 = vunpack.c.l.b16 %v580
        %v1609 = vunpack.c.l.b16 %v581
        %v1610 = vunpack.c.l.b16 %v582
        %v1611 = vunpack.c.l.b16 %v583
        %v1612 = vunpack.c.l.b16 %v584
        %v1613 = vunpack.c.l.b16 %v585
        %v1614 = vunpack.c.l.b16 %v586
        %v1615 = vunpack.c.l.b16 %v587
        %v1616 = vunpack.c.l.b16 %v588
        %v1617 = vunpack.c.l.b16 %v589
        %v1618 = vunpack.c.l.b16 %v590
        %v1619 = vunpack.c.l.b16 %v591
        %v1620 = vunpack.c.l.b16 %v592
        %v1621 = vunpack.c.l.b16 %v593
        %v1622 = vunpack.c.l.b16 %v594
        %v1623 = vunpack.c.l.b16 %v595
        %v1624 = vunpack.c.l.b16 %v596
        %v1625 = vunpack.c.l.b16 %v597
        %v1626 = vunpack.c.l.b16 %v598
        %v1627 = vunpack.c.l.b16 %v599
        %v1628 = vunpack.c.l.b16 %v600
        %v1629 = vunpack.c.l.b16 %v601
        %v1630 = vunpack.c.l.b16 %v602
        %v1631 = vunpack.c.l.b16 %v603
        %v1632 = vunpack.c.l.b16 %v604
        %v1633 = vunpack.c.l.b16 %v605
        %v1634 = vunpack.c.l.b16 %v606
        %v1635 = vunpack.c.l.b16 %v607
        %v1636 = vunpack.c.l.b16 %v608
        %v1637 = vunpack.c.l.b16 %v609
        %v1638 = vunpack.c.l.b16 %v610
        %v1639 = vunpack.c.l.b16 %v611
        %v1640 = vunpack.c.l.b16 %v612
        %v1641 = vunpack.c.l.b16 %v613
        %v1642 = vunpack.c.l.b16 %v614
        %v1643 = vunpack.c.l.b16 %v615
        %v1644 = vunpack.c.l.b16 %v616
        %v1645 = vunpack.c.l.b16 %v617
        %v1646 = vunpack.c.l.b16 %v618
        %v1647 = vunpack.c.l.b16 %v619
        %v1648 = vunpack.c.l.b16 %v620
        %v1649 = vunpack.c.l.b16 %v621
        %v1650 = vunpack.c.l.b16 %v622
        %v1651 = vunpack.c.l.b16 %v623
        %v1652 = vunpack.c.l.b16 %v624
        %v1653 = vunpack.c.l.b16 %v625
        %v1654 = vunpack.c.l.b16 %v626
        %v1655 = vunpack.c.l.b16 %v627
        %v1656 = vunpack.c.l.b16 %v628
        %v1657 = vunpack.c.l.b16 %v629
        %v1658 = vunpack.c.l.b16 %v630
        %v1659 = vunpack.c.l.b16 %v631
        %v1660 = vunpack.c.l.b16 %v632
        %v1661 = vunpack.c.l.b16 %v633
        %v1662 = vunpack.c.l.b16 %v634
        %v1663 = vunpack.c.l.b16 %v635
        %v1664 = vunpack.c.l.b16 %v636
        %v1665 = vunpack.c.l.b16 %v637
        %v1666 = vunpack.c.l.b16 %v638
        %v1667 = vunpack.c.l.b16 %v639
        %v1668 = vunpack.c.l.b16 %v640
        %v1669 = vunpack.c.l.b16 %v641
        %v1670 = vunpack.c.l.b16 %v642
        %v1671 = vunpack.c.l.b16 %v643
        %v1672 = vunpack.c.l.b16 %v644
        %v1673 = vunpack.c.l.b16 %v645
        %v1674 = vunpack.c.l.b16 %v646
        %v1675 = vunpack.c.l.b16 %v647
        %v1676 = vunpack.c.l.b16 %v648
        %v1677 = vunpack.c.l.b16 %v649
        %v1678 = vunpack.c.l.b16 %v650
        %v1679 = vunpack.c.l.b16 %v651
        %v1680 = vunpack.c.l.b16 %v652
        %v1681 = vunpack.c.l.b16 %v653
        %v1682 = vunpack.c.l.b16 %v654
        %v1683 = vunpack.c.l.b16 %v655
        %v1684 = vunpack.c.l.b16 %v656
        %v1685 = vunpack.c.l.b16 %v657
        %v1686 = vunpack.c.l.b16 %v658
        %v1687 = vunpack.c.l.b16 %v659
        %v1688 = vunpack.c.l.b16 %v660
        %v1689 = vunpack.c.l.b16 %v661
        %v1690 = vunpack.c.l.b16 %v662
        %v1691 = vunpack.c.l.b16 %v663
        %v1692 = vunpack.c.l.b16 %v664
        %v1693 = vunpack.c.l.b16 %v665
        %v1694 = vunpack.c.l.b16 %v666
        %v1695 = vunpack.c.l.b16 %v667
        %v1696 = vunpack.c.l.b16 %v668
        %v1697 = vunpack.c.l.b16 %v669
        %v1698 = vunpack.c.l.b16 %v670
        %v1699 = vunpack.c.l.b16 %v671
        %v1700 = vunpack.c.l.b16 %v672
        %v1701 = vunpack.c.l.b16 %v673
        %v1702 = vunpack.c.l.b16 %v674
        %v1703 = vunpack.c.l.b16 %v675
        %v1704 = vunpack.c.l.b16 %v676
        %v1705 = vunpack.c.l.b16 %v677
        %v1706 = vunpack.c.l.b16 %v678
        %v1707 = vunpack.c.l.b16 %v679
        %v1708 = vunpack.c.l.b16 %v680
        %v1709 = vunpack.c.l.b16 %v681
        %v1710 = vunpack.c.l.b16 %v682
        %v1711 = vunpack.c.l.b16 %v683
        %v1712 = vunpack.c.l.b16 %v684
        %v1713 = vunpack.c.l.b16 %v685
        %v1714 = vunpack.c.l.b16 %v686
        %v1715 = vunpack.c.l.b16 %v687
        %v1716 = vunpack.c.l.b16 %v688
        %v1717 = vunpack.c.l.b16 %v689
        %v1718 = vunpack.c.l.b16 %v690
        %v1719 = vunpack.c.l.b16 %v691
        %v1720 = vunpack.c.l.b16 %v692
        %v1721 = vunpack.c.l.b16 %v693
        %v1722 = vunpack.c.l.b16 %v694
        %v1723 = vunpack.c.l.b16 %v695
        %v1724 = vunpack.c.l.b16 %v696
        %v1725 = vunpack.c.l.b16 %v697
        %v1726 = vunpack.c.l.b16 %v698
        %v1727 = vunpack.c.l.b16 %v699
        %v1728 = vunpack.c.l.b16 %v700
        %v1729 = vunpack.c.l.b16 %v701
        %v1730 = vunpack.c.l.b16 %v702
        %v1731 = vunpack.c.l.b16 %v703
        %v1732 = vunpack.c.l.b16 %v704
        %v1733 = vunpack.c.l.b16 %v705
        %v1734 = vunpack.c.l.b16 %v706
        %v1735 = vunpack.c.l.b16 %v707
        %v1736 = vunpack.c.l.b16 %v708
        %v1737 = vunpack.c.l.b16 %v709
        %v1738 = vunpack.c.l.b16 %v710
        %v1739 = vunpack.c.l.b16 %v711
        %v1740 = vunpack.c.l.b16 %v712
        %v1741 = vunpack.c.l.b16 %v713
        %v1742 = vunpack.c.l.b16 %v714
        %v1743 = vunpack.c.l.b16 %v715
        %v1744 = vunpack.c.l.b16 %v716
        %v1745 = vunpack.c.l.b16 %v717
        %v1746 = vunpack.c.l.b16 %v718
        %v1747 = vunpack.c.l.b16 %v719
        %v1748 = vunpack.c.l.b16 %v720
        %v1749 = vunpack.c.l.b16 %v721
        %v1750 = vunpack.c.l.b16 %v722
        %v1751 = vunpack.c.l.b16 %v723
        %v1752 = vunpack.c.l.b16 %v724
        %v1753 = vunpack.c.l.b16 %v725
        %v1754 = vunpack.c.l.b16 %v726
        %v1755 = vunpack.c.l.b16 %v727
        %v1756 = vunpack.c.l.b16 %v728
        %v1757 = vunpack.c.l.b16 %v729
        %v1758 = vunpack.c.l.b16 %v730
        %v1759 = vunpack.c.l.b16 %v731
        %v1760 = vunpack.c.l.b16 %v732
        %v1761 = vunpack.c.l.b16 %v733
        %v1762 = vunpack.c.l.b16 %v734
        %v1763 = vunpack.c.l.b16 %v735
        %v1764 = vunpack.c.l.b16 %v736
        %v1765 = vunpack.c.l.b16 %v737
        %v1766 = vunpack.c.l.b16 %v738
        %v1767 = vunpack.c.l.b16 %v739
        %v1768 = vunpack.c.l.b16 %v740
        %v1769 = vunpack.c.l.b16 %v741
        %v1770 = vunpack.c.l.b16 %v742
        %v1771 = vunpack.c.l.b16 %v743
        %v1772 = vunpack.c.l.b16 %v744
        %v1773 = vunpack.c.l.b16 %v745
        %v1774 = vunpack.c.l.b16 %v746
        %v1775 = vunpack.c.l.b16 %v747
        %v1776 = vunpack.c.l.b16 %v748
        %v1777 = vunpack.c.l.b16 %v749
        %v1778 = vunpack.c.l.b16 %v750
        %v1779 = vunpack.c.l.b16 %v751
        %v1780 = vunpack.c.l.b16 %v752
        %v1781 = vunpack.c.l.b16 %v753
        %v1782 = vunpack.c.l.b16 %v754
        %v1783 = vunpack.c.l.b16 %v755
        %v1784 = vunpack.c.l.b16 %v756
        %v1785 = vunpack.c.l.b16 %v757
        %v1786 = vunpack.c.l.b16 %v758
        %v1787 = vunpack.c.l.b16 %v759
        %v1788 = vunpack.c.l.b16 %v760
        %v1789 = vunpack.c.l.b16 %v761
        %v1790 = vunpack.c.l.b16 %v762
        %v1791 = vunpack.c.l.b16 %v763
        %v1792 = vunpack.c.l.b16 %v764
        %v1793 = vunpack.c.l.b16 %v765
        %v1794 = vunpack.c.l.b16 %v766
        %v1795 = vunpack.c.l.b16 %v767
        %v1796 = vunpack.c.l.b16 %v768
        %v1797 = vunpack.c.l.b16 %v769
        %v1798 = vunpack.c.l.b16 %v770
        %v1799 = vunpack.c.l.b16 %v771
        %v1800 = vunpack.c.l.b16 %v772
        %v1801 = vunpack.c.l.b16 %v773
        %v1802 = vunpack.c.l.b16 %v774
        %v1803 = vunpack.c.l.b16 %v775
        %v1804 = vunpack.c.l.b16 %v776
        %v1805 = vunpack.c.l.b16 %v777
        %v1806 = vunpack.c.l.b16 %v778
        %v1807 = vunpack.c.l.b16 %v779
        %v1808 = vunpack.c.l.b16 %v780
        %v1809 = vunpack.c.l.b16 %v781
        %v1810 = vunpack.c.l.b16 %v782
        %v1811 = vunpack.c.l.b16 %v783
        %v1812 = vunpack.c.l.b16 %v784
        %v1813 = vunpack.c.l.b16 %v785
        %v1814 = vunpack.c.l.b16 %v786
        %v1815 = vunpack.c.l.b16 %v787
        %v1816 = vunpack.c.l.b16 %v788
        %v1817 = vunpack.c.l.b16 %v789
        %v1818 = vunpack.c.l.b16 %v790
        %v1819 = vunpack.c.l.b16 %v791
        %v1820 = vunpack.c.l.b16 %v792
        %v1821 = vunpack.c.l.b16 %v793
        %v1822 = vunpack.c.l.b16 %v794
        %v1823 = vunpack.c.l.b16 %v795
        %v1824 = vunpack.c.l.b16 %v796
        %v1825 = vunpack.c.l.b16 %v797
        %v1826 = vunpack.c.l.b16 %v798
        %v1827 = vunpack.c.l.b16 %v799
        %v1828 = vunpack.c.l.b16 %v800
        %v1829 = vunpack.c.l.b16 %v801
        %v1830 = vunpack.c.l.b16 %v802
        %v1831 = vunpack.c.l.b16 %v803
        %v1832 = vunpack.c.l.b16 %v804
        %v1833 = vunpack.c.l.b16 %v805
        %v1834 = vunpack.c.l.b16 %v806
        %v1835 = vunpack.c.l.b16 %v807
        %v1836 = vunpack.c.l.b16 %v808
        %v1837 = vunpack.c.l.b16 %v809
        %v1838 = vunpack.c.l.b16 %v810
        %v1839 = vunpack.c.l.b16 %v811
        %v1840 = vunpack.c.l.b16 %v812
        %v1841 = vunpack.c.l.b16 %v813
        %v1842 = vunpack.c.l.b16 %v814
        %v1843 = vunpack.c.l.b16 %v815
        %v1844 = vunpack.c.l.b16 %v816
        %v1845 = vunpack.c.l.b16 %v817
        %v1846 = vunpack.c.l.b16 %v818
        %v1847 = vunpack.c.l.b16 %v819
        %v1848 = vunpack.c.l.b16 %v820
        %v1849 = vunpack.c.l.b16 %v821
        %v1850 = vunpack.c.l.b16 %v822
        %v1851 = vunpack.c.l.b16 %v823
        %v1852 = vunpack.c.l.b16 %v824
        %v1853 = vunpack.c.l.b16 %v825
        %v1854 = vunpack.c.l.b16 %v826
        %v1855 = vunpack.c.l.b16 %v827
        %v1856 = vunpack.c.l.b16 %v828
        %v1857 = vunpack.c.l.b16 %v829
        %v1858 = vunpack.c.l.b16 %v830
        %v1859 = vunpack.c.l.b16 %v831
        %v1860 = vunpack.c.l.b16 %v832
        %v1861 = vunpack.c.l.b16 %v833
        %v1862 = vunpack.c.l.b16 %v834
        %v1863 = vunpack.c.l.b16 %v835
        %v1864 = vunpack.c.l.b16 %v836
        %v1865 = vunpack.c.l.b16 %v837
        %v1866 = vunpack.c.l.b16 %v838
        %v1867 = vunpack.c.l.b16 %v839
        %v1868 = vunpack.c.l.b16 %v840
        %v1869 = vunpack.c.l.b16 %v841
        %v1870 = vunpack.c.l.b16 %v842
        %v1871 = vunpack.c.l.b16 %v843
        %v1872 = vunpack.c.l.b16 %v844
        %v1873 = vunpack.c.l.b16 %v845
        %v1874 = vunpack.c.l.b16 %v846
        %v1875 = vunpack.c.l.b16 %v847
        %v1876 = vunpack.c.l.b16 %v848
        %v1877 = vunpack.c.l.b16 %v849
        %v1878 = vunpack.c.l.b16 %v850
        %v1879 = vunpack.c.l.b16 %v851
        %v1880 = vunpack.c.l.b16 %v852
        %v1881 = vunpack.c.l.b16 %v853
        %v1882 = vunpack.c.l.b16 %v854
        %v1883 = vunpack.c.l.b16 %v855
        %v1884 = vunpack.c.l.b16 %v856
        %v1885 = vunpack.c.l.b16 %v857
        %v1886 = vunpack.c.l.b16 %v858
        %v1887 = vunpack.c.l.b16 %v859
        %v1888 = vunpack.c.l.b16 %v860
        %v1889 = vunpack.c.l.b16 %v861
        %v1890 = vunpack.c.l.b16 %v862
        %v1891 = vunpack.c.l.b16 %v863
        %v1892 = vunpack.c.l.b16 %v864
        %v1893 = vunpack.c.l.b16 %v865
        %v1894 = vunpack.c.l.b16 %v866
        %v1895 = vunpack.c.l.b16 %v867
        %v1896 = vunpack.c.l.b16 %v868
        %v1897 = vunpack.c.l.b16 %v869
        %v1898 = vunpack.c.l.b16 %v870
        %v1899 = vunpack.c.l.b16 %v871
        %v1900 = vunpack.c.l.b16 %v872
        %v1901 = vunpack.c.l.b16 %v873
        %v1902 = vunpack.c.l.b16 %v874
        %v1903 = vunpack.c.l.b16 %v875
        %v1904 = vunpack.c.l.b16 %v876
        %v1905 = vunpack.c.l.b16 %v877
        %v1906 = vunpack.c.l.b16 %v878
        %v1907 = vunpack.c.l.b16 %v879
        %v1908 = vunpack.c.l.b16 %v880
        %v1909 = vunpack.c.l.b16 %v881
        %v1910 = vunpack.c.l.b16 %v882
        %v1911 = vunpack.c.l.b16 %v883
        %v1912 = vunpack.c.l.b16 %v884
        %v1913 = vunpack.c.l.b16 %v885
        %v1914 = vunpack.c.l.b16 %v886
        %v1915 = vunpack.c.l.b16 %v887
        %v1916 = vunpack.c.l.b16 %v888
        %v1917 = vunpack.c.l.b16 %v889
        %v1918 = vunpack.c.l.b16 %v890
        %v1919 = vunpack.c.l.b16 %v891
        %v1920 = vunpack.c.l.b16 %v892
        %v1921 = vunpack.c.l.b16 %v893
        %v1922 = vunpack.c.l.b16 %v894
        %v1923 = vunpack.c.l.b16 %v895
        %v1924 = vunpack.c.l.b16 %v896
        %v1925 = vunpack.c.l.b16 %v897
        %v1926 = vunpack.c.l.b16 %v898
        %v1927 = vunpack.c.l.b16 %v899
        %v1928 = vunpack.c.l.b16 %v900
        %v1929 = vunpack.c.l.b16 %v901
        %v1930 = vunpack.c.l.b16 %v902
        %v1931 = vunpack.c.l.b16 %v903
        %v1932 = vunpack.c.l.b16 %v904
        %v1933 = vunpack.c.l.b16 %v905
        %v1934 = vunpack.c.l.b16 %v906
        %v1935 = vunpack.c.l.b16 %v907
        %v1936 = vunpack.c.l.b16 %v908
        %v1937 = vunpack.c.l.b16 %v909
        %v1938 = vunpack.c.l.b16 %v910
        %v1939 = vunpack.c.l.b16 %v911
        %v1940 = vunpack.c.l.b16 %v912
        %v1941 = vunpack.c.l.b16 %v913
        %v1942 = vunpack.c.l.b16 %v914
        %v1943 = vunpack.c.l.b16 %v915
        %v1944 = vunpack.c.l.b16 %v916
        %v1945 = vunpack.c.l.b16 %v917
        %v1946 = vunpack.c.l.b16 %v918
        %v1947 = vunpack.c.l.b16 %v919
        %v1948 = vunpack.c.l.b16 %v920
        %v1949 = vunpack.c.l.b16 %v921
        %v1950 = vunpack.c.l.b16 %v922
        %v1951 = vunpack.c.l.b16 %v923
        %v1952 = vunpack.c.l.b16 %v924
        %v1953 = vunpack.c.l.b16 %v925
        %v1954 = vunpack.c.l.b16 %v926
        %v1955 = vunpack.c.l.b16 %v927
        %v1956 = vunpack.c.l.b16 %v928
        %v1957 = vunpack.c.l.b16 %v929
        %v1958 = vunpack.c.l.b16 %v930
        %v1959 = vunpack.c.l.b16 %v931
        %v1960 = vunpack.c.l.b16 %v932
        %v1961 = vunpack.c.l.b16 %v933
        %v1962 = vunpack.c.l.b16 %v934
        %v1963 = vunpack.c.l.b16 %v935
        %v1964 = vunpack.c.l.b16 %v936
        %v1965 = vunpack.c.l.b16 %v937
        %v1966 = vunpack.c.l.b16 %v938
        %v1967 = vunpack.c.l.b16 %v939
        %v1968 = vunpack.c.l.b16 %v940
        %v1969 = vunpack.c.l.b16 %v941
        %v1970 = vunpack.c.l.b16 %v942
        %v1971 = vunpack.c.l.b16 %v943
        %v1972 = vunpack.c.l.b16 %v944
        %v1973 = vunpack.c.l.b16 %v945
        %v1974 = vunpack.c.l.b16 %v946
        %v1975 = vunpack.c.l.b16 %v947
        %v1976 = vunpack.c.l.b16 %v948
        %v1977 = vunpack.c.l.b16 %v949
        %v1978 = vunpack.c.l.b16 %v950
        %v1979 = vunpack.c.l.b16 %v951
        %v1980 = vunpack.c.l.b16 %v952
        %v1981 = vunpack.c.l.b16 %v953
        %v1982 = vunpack.c.l.b16 %v954
        %v1983 = vunpack.c.l.b16 %v955
        %v1984 = vunpack.c.l.b16 %v956
        %v1985 = vunpack.c.l.b16 %v957
        %v1986 = vunpack.c.l.b16 %v958
        %v1987 = vunpack.c.l.b16 %v959
        %v1988 = vunpack.c.l.b16 %v960
        %v1989 = vunpack.c.l.b16 %v961
        %v1990 = vunpack.c.l.b16 %v962
        %v1991 = vunpack.c.l.b16 %v963
        %v1992 = vunpack.c.l.b16 %v964
        %v1993 = vunpack.c.l.b16 %v965
        %v1994 = vunpack.c.l.b16 %v966
        %v1995 = vunpack.c.l.b16 %v967
        %v1996 = vunpack.c.l.b16 %v968
        %v1997 = vunpack.c.l.b16 %v969
        %v1998 = vunpack.c.l.b16 %v970
        %v1999 = vunpack.c.l.b16 %v971
        %v2000 = vunpack.c.l.b16 %v972
        %v2001 = vunpack.c.l.b16 %v973
        %v2002 = vunpack.c.l.b16 %v974
        %v2003 = vunpack.c.l.b16 %v975
        %v2004 = vunpack.c.l.b16 %v976
        %v2005 = vunpack.c.l.b16 %v977
        %v2006 = vunpack.c.l.b16 %v978
        %v2007 = vunpack.c.l.b16 %v979
        %v2008 = vunpack.c.l.b16 %v980
        %v2009 = vunpack.c.l.b16 %v981
        %v2010 = vunpack.c.l.b16 %v982
        %v2011 = vunpack.c.l.b16 %v983
        %v2012 = vunpack.c.l.b16 %v984
        %v2013 = vunpack.c.l.b16 %v985
        %v2014 = vunpack.c.l.b16 %v986
        %v2015 = vunpack.c.l.b16 %v987
        %v2016 = vunpack.c.l.b16 %v988
        %v2017 = vunpack.c.l.b16 %v989
        %v2018 = vunpack.c.l.b16 %v990
        %v2019 = vunpack.c.l.b16 %v991
        %v2020 = vunpack.c.l.b16 %v992
        %v2021 = vunpack.c.l.b16 %v993
        %v2022 = vunpack.c.l.b16 %v994
        %v2023 = vunpack.c.l.b16 %v995
        %v2024 = vunpack.c.l.b16 %v996
        %v2025 = vunpack.c.l.b16 %v997
        %v2026 = vunpack.c.l.b16 %v998
        %v2027 = vunpack.c.l.b16 %v999
        %v2028 = vunpack.c.l.b16 %v1000
        %v2029 = vunpack.c.l.b16 %v1001
        %v2030 = vunpack.c.l.b16 %v1002
        %v2031 = vunpack.c.l.b16 %v1003
        %v2032 = vunpack.c.l.b16 %v1004
        %v2033 = vunpack.c.l.b16 %v1005
        %v2034 = vunpack.c.l.b16 %v1006
        %v2035 = vunpack.c.l.b16 %v1007
        %v2036 = vunpack.c.l.b16 %v1008
        %v2037 = vpack.c.b16 %v1526, %v1525
        %v2038 = vpack.c.b16 %v1528, %v1527
        %v2039 = vpack.c.b16 %v1530, %v1529
        %v2040 = vpack.c.b16 %v1532, %v1531
        %v2041 = vpack.c.b16 %v1534, %v1533
        %v2042 = vpack.c.b16 %v1536, %v1535
        %v2043 = vpack.c.b16 %v1538, %v1537
        %v2044 = vpack.c.b16 %v1540, %v1539
        %v2045 = vpack.c.b16 %v1542, %v1541
        %v2046 = vpack.c.b16 %v1544, %v1543
        %v2047 = vpack.c.b16 %v1546, %v1545
        %v2048 = vpack.c.b16 %v1548, %v1547
        %v2049 = vpack.c.b16 %v1550, %v1549
        %v2050 = vpack.c.b16 %v1552, %v1551
        %v2051 = vpack.c.b16 %v1554, %v1553
        %v2052 = vpack.c.b16 %v1556, %v1555
        %v2053 = vpack.c.b16 %v1558, %v1557
        %v2054 = vpack.c.b16 %v1560, %v1559
        %v2055 = vpack.c.b16 %v1562, %v1561
        %v2056 = vpack.c.b16 %v1564, %v1563
        %v2057 = vpack.c.b16 %v1566, %v1565
        %v2058 = vpack.c.b16 %v1568, %v1567
        %v2059 = vpack.c.b16 %v1570, %v1569
        %v2060 = vpack.c.b16 %v1572, %v1571
        %v2061 = vpack.c.b16 %v1574, %v1573
        %v2062 = vpack.c.b16 %v1576, %v1575
        %v2063 = vpack.c.b16 %v1578, %v1577
        %v2064 = vpack.c.b16 %v1580, %v1579
        %v2065 = vpack.c.b16 %v1582, %v1581
        %v2066 = vpack.c.b16 %v1584, %v1583
        %v2067 = vpack.c.b16 %v1586, %v1585
        %v2068 = vpack.c.b16 %v1588, %v1587
        %v2069 = vpack.c.b16 %v1590, %v1589
        %v2070 = vpack.c.b16 %v1592, %v1591
        %v2071 = vpack.c.b16 %v1594, %v1593
        %v2072 = vpack.c.b16 %v1596, %v1595
        %v2073 = vpack.c.b16 %v1598, %v1597
        %v2074 = vpack.c.b16 %v1600, %v1599
        %v2075 = vpack.c.b16 %v1602, %v1601
        %v2076 = vpack.c.b16 %v1604, %v1603
        %v2077 = vpack.c.b16 %v1606, %v1605
        %v2078 = vpack.c.b16 %v1608, %v1607
        %v2079 = vpack.c.b16 %v1610, %v1609
        %v2080 = vpack.c.b16 %v1612, %v1611
        %v2081 = vpack.c.b16 %v1614, %v1613
        %v2082 = vpack.c.b16 %v1616, %v1615
        %v2083 = vpack.c.b16 %v1618, %v1617
        %v2084 = vpack.c.b16 %v1620, %v1619
        %v2085 = vpack.c.b16 %v1622, %v1621
        %v2086 = vpack.c.b16 %v1624, %v1623
        %v2087 = vpack.c.b16 %v1626, %v1625
        %v2088 = vpack.c.b16 %v1628, %v1627
        %v2089 = vpack.c.b16 %v1630, %v1629
        %v2090 = vpack.c.b16 %v1632, %v1631
        %v2091 = vpack.c.b16 %v1634, %v1633
        %v2092 = vpack.c.b16 %v1636, %v1635
        %v2093 = vpack.c.b16 %v1638, %v1637
        %v2094 = vpack.c.b16 %v1640, %v1639
        %v2095 = vpack.c.b16 %v1642, %v1641
        %v2096 = vpack.c.b16 %v1644, %v1643
        %v2097 = vpack.c.b16 %v1646, %v1645
        %v2098 = vpack.c.b16 %v1648, %v1647
        %v2099 = vpack.c.b16 %v1650, %v1649
        %v2100 = vpack.c.b16 %v1652, %v1651
        %v2101 = vpack.c.b16 %v1654, %v1653
        %v2102 = vpack.c.b16 %v1656, %v1655
        %v2103 = vpack.c.b16 %v1658, %v1657
        %v2104 = vpack.c.b16 %v1660, %v1659
        %v2105 = vpack.c.b16 %v1662, %v1661
        %v2106 = vpack.c.b16 %v1664, %v1663
        %v2107 = vpack.c.b16 %v1666, %v1665
        %v2108 = vpack.c.b16 %v1668, %v1667
        %v2109 = vpack.c.b16 %v1670, %v1669
        %v2110 = vpack.c.b16 %v1672, %v1671
        %v2111 = vpack.c.b16 %v1674, %v1673
        %v2112 = vpack.c.b16 %v1676, %v1675
        %v2113 = vpack.c.b16 %v1678, %v1677
        %v2114 = vpack.c.b16 %v1680, %v1679
        %v2115 = vpack.c.b16 %v1682, %v1681
        %v2116 = vpack.c.b16 %v1684, %v1683
        %v2117 = vpack.c.b16 %v1686, %v1685
        %v2118 = vpack.c.b16 %v1688, %v1687
        %v2119 = vpack.c.b16 %v1690, %v1689
        %v2120 = vpack.c.b16 %v1692, %v1691
        %v2121 = vpack.c.b16 %v1694, %v1693
        %v2122 = vpack.c.b16 %v1696, %v1695
        %v2123 = vpack.c.b16 %v1698, %v1697
        %v2124 = vpack.c.b16 %v1700, %v1699
        %v2125 = vpack.c.b16 %v1702, %v1701
        %v2126 = vpack.c.b16 %v1704, %v1703
        %v2127 = vpack.c.b16 %v1706, %v1705
        %v2128 = vpack.c.b16 %v1708, %v1707
        %v2129 = vpack.c.b16 %v1710, %v1709
        %v2130 = vpack.c.b16 %v1712, %v1711
        %v2131 = vpack.c.b16 %v1714, %v1713
        %v2132 = vpack.c.b16 %v1716, %v1715
        %v2133 = vpack.c.b16 %v1718, %v1717
        %v2134 = vpack.c.b16 %v1720, %v1719
        %v2135 = vpack.c.b16 %v1722, %v1721
        %v2136 = vpack.c.b16 %v1724, %v1723
        %v2137 = vpack.c.b16 %v1726, %v1725
        %v2138 = vpack.c.b16 %v1728, %v1727
        %v2139 = vpack.c.b16 %v1730, %v1729
        %v2140 = vpack.c.b16 %v1732, %v1731
        %v2141 = vpack.c.b16 %v1734, %v1733
        %v2142 = vpack.c.b16 %v1736, %v1735
        %v2143 = vpack.c.b16 %v1738, %v1737
        %v2144 = vpack.c.b16 %v1740, %v1739
        %v2145 = vpack.c.b16 %v1742, %v1741
        %v2146 = vpack.c.b16 %v1744, %v1743
        %v2147 = vpack.c.b16 %v1746, %v1745
        %v2148 = vpack.c.b16 %v1748, %v1747
        %v2149 = vpack.c.b16 %v1750, %v1749
        %v2150 = vpack.c.b16 %v1752, %v1751
        %v2151 = vpack.c.b16 %v1754, %v1753
        %v2152 = vpack.c.b16 %v1756, %v1755
        %v2153 = vpack.c.b16 %v1758, %v1757
        %v2154 = vpack.c.b16 %v1760, %v1759
        %v2155 = vpack.c.b16 %v1762, %v1761
        %v2156 = vpack.c.b16 %v1764, %v1763
        %v2157 = vpack.c.b16 %v1766, %v1765
        %v2158 = vpack.c.b16 %v1768, %v1767
        %v2159 = vpack.c.b16 %v1770, %v1769
        %v2160 = vpack.c.b16 %v1772, %v1771
        %v2161 = vpack.c.b16 %v1774, %v1773
        %v2162 = vpack.c.b16 %v1776, %v1775
        %v2163 = vpack.c.b16 %v1778, %v1777
        %v2164 = vpack.c.b16 %v1780, %v1779
        %v2165 = vpack.c.b16 %v1782, %v1781
        %v2166 = vpack.c.b16 %v1784, %v1783
        %v2167 = vpack.c.b16 %v1786, %v1785
        %v2168 = vpack.c.b16 %v1788, %v1787
        %v2169 = vpack.c.b16 %v1790, %v1789
        %v2170 = vpack.c.b16 %v1792, %v1791
        %v2171 = vpack.c.b16 %v1794, %v1793
        %v2172 = vpack.c.b16 %v1796, %v1795
        %v2173 = vpack.c.b16 %v1798, %v1797
        %v2174 = vpack.c.b16 %v1800, %v1799
        %v2175 = vpack.c.b16 %v1802, %v1801
        %v2176 = vpack.c.b16 %v1804, %v1803
        %v2177 = vpack.c.b16 %v1806, %v1805
        %v2178 = vpack.c.b16 %v1808, %v1807
        %v2179 = vpack.c.b16 %v1810, %v1809
        %v2180 = vpack.c.b16 %v1812, %v1811
        %v2181 = vpack.c.b16 %v1814, %v1813
        %v2182 = vpack.c.b16 %v1816, %v1815
        %v2183 = vpack.c.b16 %v1818, %v1817
        %v2184 = vpack.c.b16 %v1820, %v1819
        %v2185 = vpack.c.b16 %v1822, %v1821
        %v2186 = vpack.c.b16 %v1824, %v1823
        %v2187 = vpack.c.b16 %v1826, %v1825
        %v2188 = vpack.c.b16 %v1828, %v1827
        %v2189 = vpack.c.b16 %v1830, %v1829
        %v2190 = vpack.c.b16 %v1832, %v1831
        %v2191 = vpack.c.b16 %v1834, %v1833
        %v2192 = vpack.c.b16 %v1836, %v1835
        %v2193 = vpack.c.b16 %v1838, %v1837
        %v2194 = vpack.c.b16 %v1840, %v1839
        %v2195 = vpack.c.b16 %v1842, %v1841
        %v2196 = vpack.c.b16 %v1844, %v1843
        %v2197 = vpack.c.b16 %v1846, %v1845
        %v2198 = vpack.c.b16 %v1848, %v1847
        %v2199 = vpack.c.b16 %v1850, %v1849
        %v2200 = vpack.c.b16 %v1852, %v1851
        %v2201 = vpack.c.b16 %v1854, %v1853
        %v2202 = vpack.c.b16 %v1856, %v1855
        %v2203 = vpack.c.b16 %v1858, %v1857
        %v2204 = vpack.c.b16 %v1860, %v1859
        %v2205 = vpack.c.b16 %v1862, %v1861
        %v2206 = vpack.c.b16 %v1864, %v1863
        %v2207 = vpack.c.b16 %v1866, %v1865
        %v2208 = vpack.c.b16 %v1868, %v1867
        %v2209 = vpack.c.b16 %v1870, %v1869
        %v2210 = vpack.c.b16 %v1872, %v1871
        %v2211 = vpack.c.b16 %v1874, %v1873
        %v2212 = vpack.c.b16 %v1876, %v1875
        %v2213 = vpack.c.b16 %v1878, %v1877
        %v2214 = vpack.c.b16 %v1880, %v1879
        %v2215 = vpack.c.b16 %v1882, %v1881
        %v2216 = vpack.c.b16 %v1884, %v1883
        %v2217 = vpack.c.b16 %v1886, %v1885
        %v2218 = vpack.c.b16 %v1888, %v1887
        %v2219 = vpack.c.b16 %v1890, %v1889
        %v2220 = vpack.c.b16 %v1892, %v1891
        %v2221 = vpack.c.b16 %v1894, %v1893
        %v2222 = vpack.c.b16 %v1896, %v1895
        %v2223 = vpack.c.b16 %v1898, %v1897
        %v2224 = vpack.c.b16 %v1900, %v1899
        %v2225 = vpack.c.b16 %v1902, %v1901
        %v2226 = vpack.c.b16 %v1904, %v1903
        %v2227 = vpack.c.b16 %v1906, %v1905
        %v2228 = vpack.c.b16 %v1908, %v1907
        %v2229 = vpack.c.b16 %v1910, %v1909
        %v2230 = vpack.c.b16 %v1912, %v1911
        %v2231 = vpack.c.b16 %v1914, %v1913
        %v2232 = vpack.c.b16 %v1916, %v1915
        %v2233 = vpack.c.b16 %v1918, %v1917
        %v2234 = vpack.c.b16 %v1920, %v1919
        %v2235 = vpack.c.b16 %v1922, %v1921
        %v2236 = vpack.c.b16 %v1924, %v1923
        %v2237 = vpack.c.b16 %v1926, %v1925
        %v2238 = vpack.c.b16 %v1928, %v1927
        %v2239 = vpack.c.b16 %v1930, %v1929
        %v2240 = vpack.c.b16 %v1932, %v1931
        %v2241 = vpack.c.b16 %v1934, %v1933
        %v2242 = vpack.c.b16 %v1936, %v1935
        %v2243 = vpack.c.b16 %v1938, %v1937
        %v2244 = vpack.c.b16 %v1940, %v1939
        %v2245 = vpack.c.b16 %v1942, %v1941
        %v2246 = vpack.c.b16 %v1944, %v1943
        %v2247 = vpack.c.b16 %v1946, %v1945
        %v2248 = vpack.c.b16 %v1948, %v1947
        %v2249 = vpack.c.b16 %v1950, %v1949
        %v2250 = vpack.c.b16 %v1952, %v1951
        %v2251 = vpack.c.b16 %v1954, %v1953
        %v2252 = vpack.c.b16 %v1956, %v1955
        %v2253 = vpack.c.b16 %v1958, %v1957
        %v2254 = vpack.c.b16 %v1960, %v1959
        %v2255 = vpack.c.b16 %v1962, %v1961
        %v2256 = vpack.c.b16 %v1964, %v1963
        %v2257 = vpack.c.b16 %v1966, %v1965
        %v2258 = vpack.c.b16 %v1968, %v1967
        %v2259 = vpack.c.b16 %v1970, %v1969
        %v2260 = vpack.c.b16 %v1972, %v1971
        %v2261 = vpack.c.b16 %v1974, %v1973
        %v2262 = vpack.c.b16 %v1976, %v1975
        %v2263 = vpack.c.b16 %v1978, %v1977
        %v2264 = vpack.c.b16 %v1980, %v1979
        %v2265 = vpack.c.b16 %v1982, %v1981
        %v2266 = vpack.c.b16 %v1984, %v1983
        %v2267 = vpack.c.b16 %v1986, %v1985
        %v2268 = vpack.c.b16 %v1988, %v1987
        %v2269 = vpack.c.b16 %v1990, %v1989
        %v2270 = vpack.c.b16 %v1992, %v1991
        %v2271 = vpack.c.b16 %v1994, %v1993
        %v2272 = vpack.c.b16 %v1996, %v1995
        %v2273 = vpack.c.b16 %v1998, %v1997
        %v2274 = vpack.c.b16 %v2000, %v1999
        %v2275 = vpack.c.b16 %v2002, %v2001
        %v2276 = vpack.c.b16 %v2004, %v2003
        %v2277 = vpack.c.b16 %v2006, %v2005
        %v2278 = vpack.c.b16 %v2008, %v2007
        %v2279 = vpack.c.b16 %v2010, %v2009
        %v2280 = vpack.c.b16 %v2012, %v2011
        %v2281 = vpack.c.b16 %v2014, %v2013
        %v2282 = vpack.c.b16 %v2016, %v2015
        %v2283 = vpack.c.b16 %v2018, %v2017
        %v2284 = vpack.c.b16 %v2020, %v2019
        %v2285 = vpack.c.b16 %v2022, %v2021
        %v2286 = vpack.c.b16 %v2024, %v2023
        %v2287 = vpack.c.b16 %v2026, %v2025
        %v2288 = vpack.c.b16 %v2028, %v2027
        %v2289 = vpack.c.b16 %v2030, %v2029
        %v2290 = vpack.c.b16 %v2032, %v2031
        %v2291 = vpack.c.b16 %v2034, %v2033
        %v2292 = vpack.c.b16 %v2036, %v2035
        %2549 = vmatpush.bf16.msra.mxu0 %v2044
        %2550 = vmatpush.bf16.msra.mxu0 %v2043
        %2551 = vmatpush.bf16.msra.mxu0 %v2042
        %2552 = vmatpush.bf16.msra.mxu0 %v2041
        %2553 = vmatpush.bf16.msra.mxu0 %v2040
        %2554 = vmatpush.bf16.msra.mxu0 %v2039
        %2555 = vmatpush.bf16.msra.mxu0 %v2038
        %2556 = vmatpush.bf16.msra.mxu0 %v2037
        %2557 = vmatmul.bf16.gmra.mxu0 %v433
        %v2558 = vpop.f32.mrf.mxu0
        %v2559 = vadd.f32 %v1011, %v2558
        %v2560 = vpop.f32.mrf.mxu0
        %v2561 = vadd.f32 %v1011, %v2560
        %2562 = vmatmul.bf16.gmra.mxu0 %v465
        %v2563 = vpop.f32.mrf.mxu0
        %v2564 = vadd.f32 %v1011, %v2563
        %v2565 = vpop.f32.mrf.mxu0
        %2566 = vdwg.mxu0
        %2567 = vmatpush.bf16.msra.mxu0 %v2052
        %2568 = vmatpush.bf16.msra.mxu0 %v2051
        %2569 = vmatpush.bf16.msra.mxu0 %v2050
        %2570 = vmatpush.bf16.msra.mxu0 %v2049
        %2571 = vmatpush.bf16.msra.mxu0 %v2048
        %2572 = vmatpush.bf16.msra.mxu0 %v2047
        %2573 = vmatpush.bf16.msra.mxu0 %v2046
        %2574 = vmatpush.bf16.msra.mxu0 %v2045
        %2575 = vmatmul.bf16.gmra.mxu0 %v434
        %v2576 = vpop.f32.mrf.mxu0
        %v2577 = vadd.f32 %v2559, %v2576
        %v2578 = vpop.f32.mrf.mxu0
        %v2579 = vadd.f32 %v2561, %v2578
        %2580 = vmatmul.bf16.gmra.mxu0 %v466
        %v2581 = vpop.f32.mrf.mxu0
        %v2582 = vadd.f32 %v2564, %v2581
        %v2583 = vpop.f32.mrf.mxu0
        %2584 = vdwg.mxu0
        %2585 = vmatpush.bf16.msra.mxu0 %v2060
        %2586 = vmatpush.bf16.msra.mxu0 %v2059
        %2587 = vmatpush.bf16.msra.mxu0 %v2058
        %2588 = vmatpush.bf16.msra.mxu0 %v2057
        %2589 = vmatpush.bf16.msra.mxu0 %v2056
        %2590 = vmatpush.bf16.msra.mxu0 %v2055
        %2591 = vmatpush.bf16.msra.mxu0 %v2054
        %2592 = vmatpush.bf16.msra.mxu0 %v2053
        %2593 = vmatmul.bf16.gmra.mxu0 %v435
        %v2594 = vpop.f32.mrf.mxu0
        %v2595 = vadd.f32 %v2577, %v2594
        %v2596 = vpop.f32.mrf.mxu0
        %v2597 = vadd.f32 %v2579, %v2596
        %2598 = vmatmul.bf16.gmra.mxu0 %v467
        %v2599 = vpop.f32.mrf.mxu0
        %v2600 = vadd.f32 %v2582, %v2599
        %v2601 = vpop.f32.mrf.mxu0
        %2602 = vdwg.mxu0
        %2603 = vmatpush.bf16.msra.mxu0 %v2068
        %2604 = vmatpush.bf16.msra.mxu0 %v2067
        %2605 = vmatpush.bf16.msra.mxu0 %v2066
        %2606 = vmatpush.bf16.msra.mxu0 %v2065
        %2607 = vmatpush.bf16.msra.mxu0 %v2064
        %2608 = vmatpush.bf16.msra.mxu0 %v2063
        %2609 = vmatpush.bf16.msra.mxu0 %v2062
        %2610 = vmatpush.bf16.msra.mxu0 %v2061
        %2611 = vmatmul.bf16.gmra.mxu0 %v436
        %v2612 = vpop.f32.mrf.mxu0
        %v2613 = vadd.f32 %v2595, %v2612
        %v2614 = vpop.f32.mrf.mxu0
        %v2615 = vadd.f32 %v2597, %v2614
        %2616 = vmatmul.bf16.gmra.mxu0 %v468
        %v2617 = vpop.f32.mrf.mxu0
        %v2618 = vadd.f32 %v2600, %v2617
        %v2619 = vpop.f32.mrf.mxu0
        %2620 = vdwg.mxu0
        %2621 = vmatpush.bf16.msra.mxu0 %v2076
        %2622 = vmatpush.bf16.msra.mxu0 %v2075
        %2623 = vmatpush.bf16.msra.mxu0 %v2074
        %2624 = vmatpush.bf16.msra.mxu0 %v2073
        %2625 = vmatpush.bf16.msra.mxu0 %v2072
        %2626 = vmatpush.bf16.msra.mxu0 %v2071
        %2627 = vmatpush.bf16.msra.mxu0 %v2070
        %2628 = vmatpush.bf16.msra.mxu0 %v2069
        %2629 = vmatmul.bf16.gmra.mxu0 %v437
        %v2630 = vpop.f32.mrf.mxu0
        %v2631 = vadd.f32 %v2613, %v2630
        %v2632 = vpop.f32.mrf.mxu0
        %v2633 = vadd.f32 %v2615, %v2632
        %2634 = vmatmul.bf16.gmra.mxu0 %v469
        %v2635 = vpop.f32.mrf.mxu0
        %v2636 = vadd.f32 %v2618, %v2635
        %v2637 = vpop.f32.mrf.mxu0
        %2638 = vdwg.mxu0
        %2639 = vmatpush.bf16.msra.mxu0 %v2084
        %2640 = vmatpush.bf16.msra.mxu0 %v2083
        %2641 = vmatpush.bf16.msra.mxu0 %v2082
        %2642 = vmatpush.bf16.msra.mxu0 %v2081
        %2643 = vmatpush.bf16.msra.mxu0 %v2080
        %2644 = vmatpush.bf16.msra.mxu0 %v2079
        %2645 = vmatpush.bf16.msra.mxu0 %v2078
        %2646 = vmatpush.bf16.msra.mxu0 %v2077
        %2647 = vmatmul.bf16.gmra.mxu0 %v438
        %v2648 = vpop.f32.mrf.mxu0
        %v2649 = vadd.f32 %v2631, %v2648
        %v2650 = vpop.f32.mrf.mxu0
        %v2651 = vadd.f32 %v2633, %v2650
        %2652 = vmatmul.bf16.gmra.mxu0 %v470
        %v2653 = vpop.f32.mrf.mxu0
        %v2654 = vadd.f32 %v2636, %v2653
        %v2655 = vpop.f32.mrf.mxu0
        %2656 = vdwg.mxu0
        %2657 = vmatpush.bf16.msra.mxu0 %v2092
        %2658 = vmatpush.bf16.msra.mxu0 %v2091
        %2659 = vmatpush.bf16.msra.mxu0 %v2090
        %2660 = vmatpush.bf16.msra.mxu0 %v2089
        %2661 = vmatpush.bf16.msra.mxu0 %v2088
        %2662 = vmatpush.bf16.msra.mxu0 %v2087
        %2663 = vmatpush.bf16.msra.mxu0 %v2086
        %2664 = vmatpush.bf16.msra.mxu0 %v2085
        %2665 = vmatmul.bf16.gmra.mxu0 %v439
        %v2666 = vpop.f32.mrf.mxu0
        %v2667 = vadd.f32 %v2649, %v2666
        %v2668 = vpop.f32.mrf.mxu0
        %v2669 = vadd.f32 %v2651, %v2668
        %2670 = vmatmul.bf16.gmra.mxu0 %v471
        %v2671 = vpop.f32.mrf.mxu0
        %v2672 = vadd.f32 %v2654, %v2671
        %v2673 = vpop.f32.mrf.mxu0
        %2674 = vdwg.mxu0
        %2675 = vmatpush.bf16.msra.mxu0 %v2100
        %2676 = vmatpush.bf16.msra.mxu0 %v2099
        %2677 = vmatpush.bf16.msra.mxu0 %v2098
        %2678 = vmatpush.bf16.msra.mxu0 %v2097
        %2679 = vmatpush.bf16.msra.mxu0 %v2096
        %2680 = vmatpush.bf16.msra.mxu0 %v2095
        %2681 = vmatpush.bf16.msra.mxu0 %v2094
        %2682 = vmatpush.bf16.msra.mxu0 %v2093
        %2683 = vmatmul.bf16.gmra.mxu0 %v440
        %v2684 = vpop.f32.mrf.mxu0
        %v2685 = vadd.f32 %v2667, %v2684
        %v2686 = vpop.f32.mrf.mxu0
        %v2687 = vadd.f32 %v2669, %v2686
        %2688 = vmatmul.bf16.gmra.mxu0 %v472
        %v2689 = vpop.f32.mrf.mxu0
        %v2690 = vadd.f32 %v2672, %v2689
        %v2691 = vpop.f32.mrf.mxu0
        %2692 = vdwg.mxu0
        %2693 = vmatpush.bf16.msra.mxu0 %v2108
        %2694 = vmatpush.bf16.msra.mxu0 %v2107
        %2695 = vmatpush.bf16.msra.mxu0 %v2106
        %2696 = vmatpush.bf16.msra.mxu0 %v2105
        %2697 = vmatpush.bf16.msra.mxu0 %v2104
        %2698 = vmatpush.bf16.msra.mxu0 %v2103
        %2699 = vmatpush.bf16.msra.mxu0 %v2102
        %2700 = vmatpush.bf16.msra.mxu0 %v2101
        %2701 = vmatmul.bf16.gmra.mxu0 %v441
        %v2702 = vpop.f32.mrf.mxu0
        %v2703 = vadd.f32 %v2685, %v2702
        %v2704 = vpop.f32.mrf.mxu0
        %v2705 = vadd.f32 %v2687, %v2704
        %2706 = vmatmul.bf16.gmra.mxu0 %v473
        %v2707 = vpop.f32.mrf.mxu0
        %v2708 = vadd.f32 %v2690, %v2707
        %v2709 = vpop.f32.mrf.mxu0
        %2710 = vdwg.mxu0
        %2711 = vmatpush.bf16.msra.mxu0 %v2116
        %2712 = vmatpush.bf16.msra.mxu0 %v2115
        %2713 = vmatpush.bf16.msra.mxu0 %v2114
        %2714 = vmatpush.bf16.msra.mxu0 %v2113
        %2715 = vmatpush.bf16.msra.mxu0 %v2112
        %2716 = vmatpush.bf16.msra.mxu0 %v2111
        %2717 = vmatpush.bf16.msra.mxu0 %v2110
        %2718 = vmatpush.bf16.msra.mxu0 %v2109
        %2719 = vmatmul.bf16.gmra.mxu0 %v442
        %v2720 = vpop.f32.mrf.mxu0
        %v2721 = vadd.f32 %v2703, %v2720
        %v2722 = vpop.f32.mrf.mxu0
        %v2723 = vadd.f32 %v2705, %v2722
        %2724 = vmatmul.bf16.gmra.mxu0 %v474
        %v2725 = vpop.f32.mrf.mxu0
        %v2726 = vadd.f32 %v2708, %v2725
        %v2727 = vpop.f32.mrf.mxu0
        %2728 = vdwg.mxu0
        %2729 = vmatpush.bf16.msra.mxu0 %v2124
        %2730 = vmatpush.bf16.msra.mxu0 %v2123
        %2731 = vmatpush.bf16.msra.mxu0 %v2122
        %2732 = vmatpush.bf16.msra.mxu0 %v2121
        %2733 = vmatpush.bf16.msra.mxu0 %v2120
        %2734 = vmatpush.bf16.msra.mxu0 %v2119
        %2735 = vmatpush.bf16.msra.mxu0 %v2118
        %2736 = vmatpush.bf16.msra.mxu0 %v2117
        %2737 = vmatmul.bf16.gmra.mxu0 %v443
        %v2738 = vpop.f32.mrf.mxu0
        %v2739 = vadd.f32 %v2721, %v2738
        %v2740 = vpop.f32.mrf.mxu0
        %v2741 = vadd.f32 %v2723, %v2740
        %2742 = vmatmul.bf16.gmra.mxu0 %v475
        %v2743 = vpop.f32.mrf.mxu0
        %v2744 = vadd.f32 %v2726, %v2743
        %v2745 = vpop.f32.mrf.mxu0
        %2746 = vdwg.mxu0
        %2747 = vmatpush.bf16.msra.mxu0 %v2132
        %2748 = vmatpush.bf16.msra.mxu0 %v2131
        %2749 = vmatpush.bf16.msra.mxu0 %v2130
        %2750 = vmatpush.bf16.msra.mxu0 %v2129
        %2751 = vmatpush.bf16.msra.mxu0 %v2128
        %2752 = vmatpush.bf16.msra.mxu0 %v2127
        %2753 = vmatpush.bf16.msra.mxu0 %v2126
        %2754 = vmatpush.bf16.msra.mxu0 %v2125
        %2755 = vmatmul.bf16.gmra.mxu0 %v444
        %v2756 = vpop.f32.mrf.mxu0
        %v2757 = vadd.f32 %v2739, %v2756
        %v2758 = vpop.f32.mrf.mxu0
        %v2759 = vadd.f32 %v2741, %v2758
        %2760 = vmatmul.bf16.gmra.mxu0 %v476
        %v2761 = vpop.f32.mrf.mxu0
        %v2762 = vadd.f32 %v2744, %v2761
        %v2763 = vpop.f32.mrf.mxu0
        %2764 = vdwg.mxu0
        %2765 = vmatpush.bf16.msra.mxu0 %v2140
        %2766 = vmatpush.bf16.msra.mxu0 %v2139
        %2767 = vmatpush.bf16.msra.mxu0 %v2138
        %2768 = vmatpush.bf16.msra.mxu0 %v2137
        %2769 = vmatpush.bf16.msra.mxu0 %v2136
        %2770 = vmatpush.bf16.msra.mxu0 %v2135
        %2771 = vmatpush.bf16.msra.mxu0 %v2134
        %2772 = vmatpush.bf16.msra.mxu0 %v2133
        %2773 = vmatmul.bf16.gmra.mxu0 %v445
        %v2774 = vpop.f32.mrf.mxu0
        %v2775 = vadd.f32 %v2757, %v2774
        %v2776 = vpop.f32.mrf.mxu0
        %v2777 = vadd.f32 %v2759, %v2776
        %2778 = vmatmul.bf16.gmra.mxu0 %v477
        %v2779 = vpop.f32.mrf.mxu0
        %v2780 = vadd.f32 %v2762, %v2779
        %v2781 = vpop.f32.mrf.mxu0
        %2782 = vdwg.mxu0
        %2783 = vmatpush.bf16.msra.mxu0 %v2148
        %2784 = vmatpush.bf16.msra.mxu0 %v2147
        %2785 = vmatpush.bf16.msra.mxu0 %v2146
        %2786 = vmatpush.bf16.msra.mxu0 %v2145
        %2787 = vmatpush.bf16.msra.mxu0 %v2144
        %2788 = vmatpush.bf16.msra.mxu0 %v2143
        %2789 = vmatpush.bf16.msra.mxu0 %v2142
        %2790 = vmatpush.bf16.msra.mxu0 %v2141
        %2791 = vmatmul.bf16.gmra.mxu0 %v446
        %v2792 = vpop.f32.mrf.mxu0
        %v2793 = vadd.f32 %v2775, %v2792
        %v2794 = vpop.f32.mrf.mxu0
        %v2795 = vadd.f32 %v2777, %v2794
        %2796 = vmatmul.bf16.gmra.mxu0 %v478
        %v2797 = vpop.f32.mrf.mxu0
        %v2798 = vadd.f32 %v2780, %v2797
        %v2799 = vpop.f32.mrf.mxu0
        %2800 = vdwg.mxu0
        %2801 = vmatpush.bf16.msra.mxu0 %v2156
        %2802 = vmatpush.bf16.msra.mxu0 %v2155
        %2803 = vmatpush.bf16.msra.mxu0 %v2154
        %2804 = vmatpush.bf16.msra.mxu0 %v2153
        %2805 = vmatpush.bf16.msra.mxu0 %v2152
        %2806 = vmatpush.bf16.msra.mxu0 %v2151
        %2807 = vmatpush.bf16.msra.mxu0 %v2150
        %2808 = vmatpush.bf16.msra.mxu0 %v2149
        %2809 = vmatmul.bf16.gmra.mxu0 %v447
        %v2810 = vpop.f32.mrf.mxu0
        %v2811 = vadd.f32 %v2793, %v2810
        %v2812 = vpop.f32.mrf.mxu0
        %v2813 = vadd.f32 %v2795, %v2812
        %2814 = vmatmul.bf16.gmra.mxu0 %v479
        %v2815 = vpop.f32.mrf.mxu0
        %v2816 = vadd.f32 %v2798, %v2815
        %v2817 = vpop.f32.mrf.mxu0
        %2818 = vdwg.mxu0
        %2819 = vmatpush.bf16.msra.mxu0 %v2164
        %2820 = vmatpush.bf16.msra.mxu0 %v2163
        %2821 = vmatpush.bf16.msra.mxu0 %v2162
        %2822 = vmatpush.bf16.msra.mxu0 %v2161
        %2823 = vmatpush.bf16.msra.mxu0 %v2160
        %2824 = vmatpush.bf16.msra.mxu0 %v2159
        %2825 = vmatpush.bf16.msra.mxu0 %v2158
        %2826 = vmatpush.bf16.msra.mxu0 %v2157
        %2827 = vmatmul.bf16.gmra.mxu0 %v448
        %v2828 = vpop.f32.mrf.mxu0
        %v2829 = vadd.f32 %v2811, %v2828
        %v2830 = vpop.f32.mrf.mxu0
        %v2831 = vadd.f32 %v2813, %v2830
        %2832 = vmatmul.bf16.gmra.mxu0 %v480
        %v2833 = vpop.f32.mrf.mxu0
        %v2834 = vadd.f32 %v2816, %v2833
        %v2835 = vpop.f32.mrf.mxu0
        %2836 = vdwg.mxu0
        %2837 = vmatpush.bf16.msra.mxu0 %v2172
        %2838 = vmatpush.bf16.msra.mxu0 %v2171
        %2839 = vmatpush.bf16.msra.mxu0 %v2170
        %2840 = vmatpush.bf16.msra.mxu0 %v2169
        %2841 = vmatpush.bf16.msra.mxu0 %v2168
        %2842 = vmatpush.bf16.msra.mxu0 %v2167
        %2843 = vmatpush.bf16.msra.mxu0 %v2166
        %2844 = vmatpush.bf16.msra.mxu0 %v2165
        %2845 = vmatmul.bf16.gmra.mxu0 %v449
        %v2846 = vpop.f32.mrf.mxu0
        %v2847 = vadd.f32 %v2829, %v2846
        %v2848 = vpop.f32.mrf.mxu0
        %v2849 = vadd.f32 %v2831, %v2848
        %2850 = vmatmul.bf16.gmra.mxu0 %v481
        %v2851 = vpop.f32.mrf.mxu0
        %v2852 = vadd.f32 %v2834, %v2851
        %v2853 = vpop.f32.mrf.mxu0
        %2854 = vdwg.mxu0
        %2855 = vmatpush.bf16.msra.mxu0 %v2180
        %2856 = vmatpush.bf16.msra.mxu0 %v2179
        %2857 = vmatpush.bf16.msra.mxu0 %v2178
        %2858 = vmatpush.bf16.msra.mxu0 %v2177
        %2859 = vmatpush.bf16.msra.mxu0 %v2176
        %2860 = vmatpush.bf16.msra.mxu0 %v2175
        %2861 = vmatpush.bf16.msra.mxu0 %v2174
        %2862 = vmatpush.bf16.msra.mxu0 %v2173
        %2863 = vmatmul.bf16.gmra.mxu0 %v450
        %v2864 = vpop.f32.mrf.mxu0
        %v2865 = vadd.f32 %v2847, %v2864
        %v2866 = vpop.f32.mrf.mxu0
        %v2867 = vadd.f32 %v2849, %v2866
        %2868 = vmatmul.bf16.gmra.mxu0 %v482
        %v2869 = vpop.f32.mrf.mxu0
        %v2870 = vadd.f32 %v2852, %v2869
        %v2871 = vpop.f32.mrf.mxu0
        %2872 = vdwg.mxu0
        %2873 = vmatpush.bf16.msra.mxu0 %v2188
        %2874 = vmatpush.bf16.msra.mxu0 %v2187
        %2875 = vmatpush.bf16.msra.mxu0 %v2186
        %2876 = vmatpush.bf16.msra.mxu0 %v2185
        %2877 = vmatpush.bf16.msra.mxu0 %v2184
        %2878 = vmatpush.bf16.msra.mxu0 %v2183
        %2879 = vmatpush.bf16.msra.mxu0 %v2182
        %2880 = vmatpush.bf16.msra.mxu0 %v2181
        %2881 = vmatmul.bf16.gmra.mxu0 %v451
        %v2882 = vpop.f32.mrf.mxu0
        %v2883 = vadd.f32 %v2865, %v2882
        %v2884 = vpop.f32.mrf.mxu0
        %v2885 = vadd.f32 %v2867, %v2884
        %2886 = vmatmul.bf16.gmra.mxu0 %v483
        %v2887 = vpop.f32.mrf.mxu0
        %v2888 = vadd.f32 %v2870, %v2887
        %v2889 = vpop.f32.mrf.mxu0
        %2890 = vdwg.mxu0
        %2891 = vmatpush.bf16.msra.mxu0 %v2196
        %2892 = vmatpush.bf16.msra.mxu0 %v2195
        %2893 = vmatpush.bf16.msra.mxu0 %v2194
        %2894 = vmatpush.bf16.msra.mxu0 %v2193
        %2895 = vmatpush.bf16.msra.mxu0 %v2192
        %2896 = vmatpush.bf16.msra.mxu0 %v2191
        %2897 = vmatpush.bf16.msra.mxu0 %v2190
        %2898 = vmatpush.bf16.msra.mxu0 %v2189
        %2899 = vmatmul.bf16.gmra.mxu0 %v452
        %v2900 = vpop.f32.mrf.mxu0
        %v2901 = vadd.f32 %v2883, %v2900
        %v2902 = vpop.f32.mrf.mxu0
        %v2903 = vadd.f32 %v2885, %v2902
        %2904 = vmatmul.bf16.gmra.mxu0 %v484
        %v2905 = vpop.f32.mrf.mxu0
        %v2906 = vadd.f32 %v2888, %v2905
        %v2907 = vpop.f32.mrf.mxu0
        %2908 = vdwg.mxu0
        %2909 = vmatpush.bf16.msra.mxu0 %v2204
        %2910 = vmatpush.bf16.msra.mxu0 %v2203
        %2911 = vmatpush.bf16.msra.mxu0 %v2202
        %2912 = vmatpush.bf16.msra.mxu0 %v2201
        %2913 = vmatpush.bf16.msra.mxu0 %v2200
        %2914 = vmatpush.bf16.msra.mxu0 %v2199
        %2915 = vmatpush.bf16.msra.mxu0 %v2198
        %2916 = vmatpush.bf16.msra.mxu0 %v2197
        %2917 = vmatmul.bf16.gmra.mxu0 %v453
        %v2918 = vpop.f32.mrf.mxu0
        %v2919 = vadd.f32 %v2901, %v2918
        %v2920 = vpop.f32.mrf.mxu0
        %v2921 = vadd.f32 %v2903, %v2920
        %2922 = vmatmul.bf16.gmra.mxu0 %v485
        %v2923 = vpop.f32.mrf.mxu0
        %v2924 = vadd.f32 %v2906, %v2923
        %v2925 = vpop.f32.mrf.mxu0
        %2926 = vdwg.mxu0
        %2927 = vmatpush.bf16.msra.mxu0 %v2212
        %2928 = vmatpush.bf16.msra.mxu0 %v2211
        %2929 = vmatpush.bf16.msra.mxu0 %v2210
        %2930 = vmatpush.bf16.msra.mxu0 %v2209
        %2931 = vmatpush.bf16.msra.mxu0 %v2208
        %2932 = vmatpush.bf16.msra.mxu0 %v2207
        %2933 = vmatpush.bf16.msra.mxu0 %v2206
        %2934 = vmatpush.bf16.msra.mxu0 %v2205
        %2935 = vmatmul.bf16.gmra.mxu0 %v454
        %v2936 = vpop.f32.mrf.mxu0
        %v2937 = vadd.f32 %v2919, %v2936
        %v2938 = vpop.f32.mrf.mxu0
        %v2939 = vadd.f32 %v2921, %v2938
        %2940 = vmatmul.bf16.gmra.mxu0 %v486
        %v2941 = vpop.f32.mrf.mxu0
        %v2942 = vadd.f32 %v2924, %v2941
        %v2943 = vpop.f32.mrf.mxu0
        %2944 = vdwg.mxu0
        %2945 = vmatpush.bf16.msra.mxu0 %v2220
        %2946 = vmatpush.bf16.msra.mxu0 %v2219
        %2947 = vmatpush.bf16.msra.mxu0 %v2218
        %2948 = vmatpush.bf16.msra.mxu0 %v2217
        %2949 = vmatpush.bf16.msra.mxu0 %v2216
        %2950 = vmatpush.bf16.msra.mxu0 %v2215
        %2951 = vmatpush.bf16.msra.mxu0 %v2214
        %2952 = vmatpush.bf16.msra.mxu0 %v2213
        %2953 = vmatmul.bf16.gmra.mxu0 %v455
        %v2954 = vpop.f32.mrf.mxu0
        %v2955 = vadd.f32 %v2937, %v2954
        %v2956 = vpop.f32.mrf.mxu0
        %v2957 = vadd.f32 %v2939, %v2956
        %2958 = vmatmul.bf16.gmra.mxu0 %v487
        %v2959 = vpop.f32.mrf.mxu0
        %v2960 = vadd.f32 %v2942, %v2959
        %v2961 = vpop.f32.mrf.mxu0
        %2962 = vdwg.mxu0
        %2963 = vmatpush.bf16.msra.mxu0 %v2228
        %2964 = vmatpush.bf16.msra.mxu0 %v2227
        %2965 = vmatpush.bf16.msra.mxu0 %v2226
        %2966 = vmatpush.bf16.msra.mxu0 %v2225
        %2967 = vmatpush.bf16.msra.mxu0 %v2224
        %2968 = vmatpush.bf16.msra.mxu0 %v2223
        %2969 = vmatpush.bf16.msra.mxu0 %v2222
        %2970 = vmatpush.bf16.msra.mxu0 %v2221
        %2971 = vmatmul.bf16.gmra.mxu0 %v456
        %v2972 = vpop.f32.mrf.mxu0
        %v2973 = vadd.f32 %v2955, %v2972
        %v2974 = vpop.f32.mrf.mxu0
        %v2975 = vadd.f32 %v2957, %v2974
        %2976 = vmatmul.bf16.gmra.mxu0 %v488
        %v2977 = vpop.f32.mrf.mxu0
        %v2978 = vadd.f32 %v2960, %v2977
        %v2979 = vpop.f32.mrf.mxu0
        %2980 = vdwg.mxu0
        %2981 = vmatpush.bf16.msra.mxu0 %v2236
        %2982 = vmatpush.bf16.msra.mxu0 %v2235
        %2983 = vmatpush.bf16.msra.mxu0 %v2234
        %2984 = vmatpush.bf16.msra.mxu0 %v2233
        %2985 = vmatpush.bf16.msra.mxu0 %v2232
        %2986 = vmatpush.bf16.msra.mxu0 %v2231
        %2987 = vmatpush.bf16.msra.mxu0 %v2230
        %2988 = vmatpush.bf16.msra.mxu0 %v2229
        %2989 = vmatmul.bf16.gmra.mxu0 %v457
        %v2990 = vpop.f32.mrf.mxu0
        %v2991 = vadd.f32 %v2973, %v2990
        %v2992 = vpop.f32.mrf.mxu0
        %v2993 = vadd.f32 %v2975, %v2992
        %2994 = vmatmul.bf16.gmra.mxu0 %v489
        %v2995 = vpop.f32.mrf.mxu0
        %v2996 = vadd.f32 %v2978, %v2995
        %v2997 = vpop.f32.mrf.mxu0
        %2998 = vdwg.mxu0
        %2999 = vmatpush.bf16.msra.mxu0 %v2244
        %3000 = vmatpush.bf16.msra.mxu0 %v2243
        %3001 = vmatpush.bf16.msra.mxu0 %v2242
        %3002 = vmatpush.bf16.msra.mxu0 %v2241
        %3003 = vmatpush.bf16.msra.mxu0 %v2240
        %3004 = vmatpush.bf16.msra.mxu0 %v2239
        %3005 = vmatpush.bf16.msra.mxu0 %v2238
        %3006 = vmatpush.bf16.msra.mxu0 %v2237
        %3007 = vmatmul.bf16.gmra.mxu0 %v458
        %v3008 = vpop.f32.mrf.mxu0
        %v3009 = vadd.f32 %v2991, %v3008
        %v3010 = vpop.f32.mrf.mxu0
        %v3011 = vadd.f32 %v2993, %v3010
        %3012 = vmatmul.bf16.gmra.mxu0 %v490
        %v3013 = vpop.f32.mrf.mxu0
        %v3014 = vadd.f32 %v2996, %v3013
        %v3015 = vpop.f32.mrf.mxu0
        %3016 = vdwg.mxu0
        %3017 = vmatpush.bf16.msra.mxu0 %v2252
        %3018 = vmatpush.bf16.msra.mxu0 %v2251
        %3019 = vmatpush.bf16.msra.mxu0 %v2250
        %3020 = vmatpush.bf16.msra.mxu0 %v2249
        %3021 = vmatpush.bf16.msra.mxu0 %v2248
        %3022 = vmatpush.bf16.msra.mxu0 %v2247
        %3023 = vmatpush.bf16.msra.mxu0 %v2246
        %3024 = vmatpush.bf16.msra.mxu0 %v2245
        %3025 = vmatmul.bf16.gmra.mxu0 %v459
        %v3026 = vpop.f32.mrf.mxu0
        %v3027 = vadd.f32 %v3009, %v3026
        %v3028 = vpop.f32.mrf.mxu0
        %v3029 = vadd.f32 %v3011, %v3028
        %3030 = vmatmul.bf16.gmra.mxu0 %v491
        %v3031 = vpop.f32.mrf.mxu0
        %v3032 = vadd.f32 %v3014, %v3031
        %v3033 = vpop.f32.mrf.mxu0
        %3034 = vdwg.mxu0
        %3035 = vmatpush.bf16.msra.mxu0 %v2260
        %3036 = vmatpush.bf16.msra.mxu0 %v2259
        %3037 = vmatpush.bf16.msra.mxu0 %v2258
        %3038 = vmatpush.bf16.msra.mxu0 %v2257
        %3039 = vmatpush.bf16.msra.mxu0 %v2256
        %3040 = vmatpush.bf16.msra.mxu0 %v2255
        %3041 = vmatpush.bf16.msra.mxu0 %v2254
        %3042 = vmatpush.bf16.msra.mxu0 %v2253
        %3043 = vmatmul.bf16.gmra.mxu0 %v460
        %v3044 = vpop.f32.mrf.mxu0
        %v3045 = vadd.f32 %v3027, %v3044
        %v3046 = vpop.f32.mrf.mxu0
        %v3047 = vadd.f32 %v3029, %v3046
        %3048 = vmatmul.bf16.gmra.mxu0 %v492
        %v3049 = vpop.f32.mrf.mxu0
        %v3050 = vadd.f32 %v3032, %v3049
        %v3051 = vpop.f32.mrf.mxu0
        %3052 = vdwg.mxu0
        %3053 = vmatpush.bf16.msra.mxu0 %v2268
        %3054 = vmatpush.bf16.msra.mxu0 %v2267
        %3055 = vmatpush.bf16.msra.mxu0 %v2266
        %3056 = vmatpush.bf16.msra.mxu0 %v2265
        %3057 = vmatpush.bf16.msra.mxu0 %v2264
        %3058 = vmatpush.bf16.msra.mxu0 %v2263
        %3059 = vmatpush.bf16.msra.mxu0 %v2262
        %3060 = vmatpush.bf16.msra.mxu0 %v2261
        %3061 = vmatmul.bf16.gmra.mxu0 %v461
        %v3062 = vpop.f32.mrf.mxu0
        %v3063 = vadd.f32 %v3045, %v3062
        %v3064 = vpop.f32.mrf.mxu0
        %v3065 = vadd.f32 %v3047, %v3064
        %3066 = vmatmul.bf16.gmra.mxu0 %v493
        %v3067 = vpop.f32.mrf.mxu0
        %v3068 = vadd.f32 %v3050, %v3067
        %v3069 = vpop.f32.mrf.mxu0
        %3070 = vdwg.mxu0
        %3071 = vmatpush.bf16.msra.mxu0 %v2276
        %3072 = vmatpush.bf16.msra.mxu0 %v2275
        %3073 = vmatpush.bf16.msra.mxu0 %v2274
        %3074 = vmatpush.bf16.msra.mxu0 %v2273
        %3075 = vmatpush.bf16.msra.mxu0 %v2272
        %3076 = vmatpush.bf16.msra.mxu0 %v2271
        %3077 = vmatpush.bf16.msra.mxu0 %v2270
        %3078 = vmatpush.bf16.msra.mxu0 %v2269
        %3079 = vmatmul.bf16.gmra.mxu0 %v462
        %v3080 = vpop.f32.mrf.mxu0
        %v3081 = vadd.f32 %v3063, %v3080
        %v3082 = vpop.f32.mrf.mxu0
        %v3083 = vadd.f32 %v3065, %v3082
        %3084 = vmatmul.bf16.gmra.mxu0 %v494
        %v3085 = vpop.f32.mrf.mxu0
        %v3086 = vadd.f32 %v3068, %v3085
        %v3087 = vpop.f32.mrf.mxu0
        %3088 = vdwg.mxu0
        %3089 = vmatpush.bf16.msra.mxu0 %v2284
        %3090 = vmatpush.bf16.msra.mxu0 %v2283
        %3091 = vmatpush.bf16.msra.mxu0 %v2282
        %3092 = vmatpush.bf16.msra.mxu0 %v2281
        %3093 = vmatpush.bf16.msra.mxu0 %v2280
        %3094 = vmatpush.bf16.msra.mxu0 %v2279
        %3095 = vmatpush.bf16.msra.mxu0 %v2278
        %3096 = vmatpush.bf16.msra.mxu0 %v2277
        %3097 = vmatmul.bf16.gmra.mxu0 %v463
        %v3098 = vpop.f32.mrf.mxu0
        %v3099 = vadd.f32 %v3081, %v3098
        %v3100 = vpop.f32.mrf.mxu0
        %v3101 = vadd.f32 %v3083, %v3100
        %3102 = vmatmul.bf16.gmra.mxu0 %v495
        %v3103 = vpop.f32.mrf.mxu0
        %v3104 = vadd.f32 %v3086, %v3103
        %v3105 = vpop.f32.mrf.mxu0
        %3106 = vdwg.mxu0
        %3107 = vmatpush.bf16.msra.mxu0 %v2292
        %3108 = vmatpush.bf16.msra.mxu0 %v2291
        %3109 = vmatpush.bf16.msra.mxu0 %v2290
        %3110 = vmatpush.bf16.msra.mxu0 %v2289
        %3111 = vmatpush.bf16.msra.mxu0 %v2288
        %3112 = vmatpush.bf16.msra.mxu0 %v2287
        %3113 = vmatpush.bf16.msra.mxu0 %v2286
        %3114 = vmatpush.bf16.msra.mxu0 %v2285
        %3115 = vmatmul.bf16.gmra.mxu0 %v464
        %v3116 = vpop.f32.mrf.mxu0
        %v3117 = vadd.f32 %v3099, %v3116
        %v3118 = vpop.f32.mrf.mxu0
        %v3119 = vadd.f32 %v3101, %v3118
        %3120 = vmatmul.bf16.gmra.mxu0 %v496
        %v3121 = vpop.f32.mrf.mxu0
        %v3122 = vadd.f32 %v3104, %v3121
        %v3123 = vpop.f32.mrf.mxu0
        %3124 = vdwg.mxu0
        %v3125 = vmax.f32 %v3117, 0.0
        %v3126 = vmax.f32 %v3119, 0.0
        %v3127 = vmax.f32 %v3122, 0.0
        %v3128 = vpack.c.bf16 %v3126, %v3125
        %v3129 = vpack.c.bf16 %v3127, %v3127
        %v3130 = vld [vmem:[%s3] sm:$0xf]
        %v3131 = vld [vmem:[%s3 + $0x4] sm:$0xf]
        %v3132 = vld [vmem:[%s3 + $0x8] sm:$0xf]
        %v3133 = vld [vmem:[%s3 + $0xc] sm:$0xf]
        %v3134 = vld [vmem:[%s3 + $0x10] sm:$0xf]
        %v3135 = vld [vmem:[%s3 + $0x14] sm:$0xf]
        %v3136 = vld [vmem:[%s3 + $0x18] sm:$0xf]
        %v3137 = vld [vmem:[%s3 + $0x1c] sm:$0xf]
        %v3138 = vld [vmem:[%s3 + $0x20] sm:$0xf]
        %v3139 = vld [vmem:[%s3 + $0x24] sm:$0xf]
        %v3140 = vld [vmem:[%s3 + $0x28] sm:$0xf]
        %v3141 = vld [vmem:[%s3 + $0x2c] sm:$0xf]
        %v3142 = vld [vmem:[%s3 + $0x30] sm:$0xf]
        %v3143 = vld [vmem:[%s3 + $0x34] sm:$0xf]
        %v3144 = vld [vmem:[%s3 + $0x38] sm:$0xf]
        %v3145 = vld [vmem:[%s3 + $0x3c] sm:$0xf]
        %v3146 = vld [vmem:[%s4] sm:$0x1]
        %v3148 = vperm.slane %v3146, 0
        %v3166 = vunpack.c.l.b16 %v3130
        %v3167 = vunpack.c.l.b16 %v3131
        %v3168 = vunpack.c.l.b16 %v3132
        %v3169 = vunpack.c.l.b16 %v3133
        %v3170 = vunpack.c.l.b16 %v3134
        %v3171 = vunpack.c.l.b16 %v3135
        %v3172 = vunpack.c.l.b16 %v3136
        %v3173 = vunpack.c.l.b16 %v3137
        %v3174 = vunpack.c.l.b16 %v3138
        %v3175 = vunpack.c.l.b16 %v3139
        %v3176 = vunpack.c.l.b16 %v3140
        %v3177 = vunpack.c.l.b16 %v3141
        %v3178 = vunpack.c.l.b16 %v3142
        %v3179 = vunpack.c.l.b16 %v3143
        %v3180 = vunpack.c.l.b16 %v3144
        %v3181 = vunpack.c.l.b16 %v3145
        %v3182 = vpack.c.b16 %v3167, %v3166
        %v3183 = vpack.c.b16 %v3169, %v3168
        %v3184 = vpack.c.b16 %v3171, %v3170
        %v3185 = vpack.c.b16 %v3173, %v3172
        %v3186 = vpack.c.b16 %v3175, %v3174
        %v3187 = vpack.c.b16 %v3177, %v3176
        %v3188 = vpack.c.b16 %v3179, %v3178
        %v3189 = vpack.c.b16 %v3181, %v3180
        %3198 = vmatpush.bf16.msra.mxu0 %v3189
        %3199 = vmatpush.bf16.msra.mxu0 %v3188
        %3200 = vmatpush.bf16.msra.mxu0 %v3187
        %3201 = vmatpush.bf16.msra.mxu0 %v3186
        %3202 = vmatpush.bf16.msra.mxu0 %v3185
        %3203 = vmatpush.bf16.msra.mxu0 %v3184
        %3204 = vmatpush.bf16.msra.mxu0 %v3183
        %3205 = vmatpush.bf16.msra.mxu0 %v3182
        %3206 = vmatmul.bf16.gmra.mxu0 %v3128
        %v3207 = vpop.f32.mrf.mxu0
        %v3208 = vadd.f32 %v3148, %v3207
        %v3209 = vpop.f32.mrf.mxu0
        %v3210 = vadd.f32 %v3148, %v3209
        %3211 = vmatmul.bf16.gmra.mxu0 %v3129
        %v3212 = vpop.f32.mrf.mxu0
        %v3213 = vadd.f32 %v3148, %v3212
        %v3214 = vpop.f32.mrf.mxu0
        %3215 = vdwg.mxu0
        %v3216 = vmax.f32 %v3208, 0.0
        %v3217 = vmax.f32 %v3210, 0.0
        %v3218 = vmax.f32 %v3213, 0.0
        %v3219 = vpack.c.bf16 %v3217, %v3216
        %v3220 = vpack.c.bf16 %v3218, %v3218
        %v3221 = vld [vmem:[%s5] sm:$0xf]
        %v3222 = vld [vmem:[%s5 + $0x4] sm:$0xf]
        %v3223 = vld [vmem:[%s5 + $0x8] sm:$0xf]
        %v3224 = vld [vmem:[%s5 + $0xc] sm:$0xf]
        %v3225 = vld [vmem:[%s5 + $0x10] sm:$0xf]
        %v3226 = vld [vmem:[%s5 + $0x14] sm:$0xf]
        %v3227 = vld [vmem:[%s5 + $0x18] sm:$0xf]
        %v3228 = vld [vmem:[%s5 + $0x1c] sm:$0xf]
        %v3229 = vld [vmem:[%s6] sm:$0x1]
        %v3231 = vperm.slane %v3229, 0
        %v3241 = vunpack.c.l.b16 %v3221
        %v3242 = vunpack.c.l.b16 %v3222
        %v3243 = vunpack.c.l.b16 %v3223
        %v3244 = vunpack.c.l.b16 %v3224
        %v3245 = vunpack.c.l.b16 %v3225
        %v3246 = vunpack.c.l.b16 %v3226
        %v3247 = vunpack.c.l.b16 %v3227
        %v3248 = vunpack.c.l.b16 %v3228
        %v3249 = vpack.c.b16 %v3242, %v3241
        %v3250 = vpack.c.b16 %v3244, %v3243
        %v3251 = vpack.c.b16 %v3246, %v3245
        %v3252 = vpack.c.b16 %v3248, %v3247
        %vm3257 = vcmask 523264
        %v3259 = vsel %vm3257, %v3219, 0
        %v3262 = vsel %vm3257, %v3220, 0
        %3264 = vmatpush.bf16.msra.mxu0 0
        %3265 = vmatpush.bf16.msra.mxu0 0
        %3266 = vmatpush.bf16.msra.mxu0 0
        %3267 = vmatpush.bf16.msra.mxu0 0
        %3268 = vmatpush.bf16.msra.mxu0 %v3252
        %3269 = vmatpush.bf16.msra.mxu0 %v3251
        %3270 = vmatpush.bf16.msra.mxu0 %v3250
        %3271 = vmatpush.bf16.msra.mxu0 %v3249
        %3272 = vmatmul.bf16.gmra.mxu0 %v3259
        %v3273 = vpop.f32.mrf.mxu0
        %v3274 = vadd.f32 %v3231, %v3273
        %v3275 = vpop.f32.mrf.mxu0
        %v3276 = vadd.f32 %v3231, %v3275
        %3277 = vmatmul.bf16.gmra.mxu0 %v3262
        %v3278 = vpop.f32.mrf.mxu0
        %v3279 = vadd.f32 %v3231, %v3278
        %v3280 = vpop.f32.mrf.mxu0
        %3281 = vdwg.mxu0
        %v3282 = vlaneseq
        %v3283 = vand.u32 %v3282, 127
        %vm3284 = vcmp.lt.s32.totalorder %v3283, 10
        %3285 = vmax.xlane.f32.xlu0 %v3274
        %v3286 = vpop.xlane.xlu0 %3285
        %3287 = vmax.xlane.f32.xlu0 %v3276
        %v3288 = vpop.xlane.xlu0 %3287
        %3289 = vmax.xlane.f32.xlu0 %v3279
        %v3290 = vpop.xlane.xlu0 %3289
        %v3291 = vsub.f32 %v3274, %v3286
        %v3292 = vsub.f32 %v3276, %v3288
        %v3293 = vsub.f32 %v3279, %v3290
        %v3294 = vmul.f32 %v3291, 1.442695
        %v3295 = vpow.pop %v3294
        %v3296 = vmul.f32 %v3292, 1.442695
        %v3297 = vpow.pop %v3296
        %v3298 = vmul.f32 %v3293, 1.442695
        %v3299 = vpow.pop %v3298
        %v3300 = vsel %vm3284, %v3295, 0.0
        %v3301 = vsel %vm3284, %v3297, 0.0
        %v3302 = vsel %vm3284, %v3299, 0.0
        %3303 = vadd.xlane.f32.xlu0 %v3300
        %v3304 = vpop.xlane.xlu0 %3303
        %3305 = vadd.xlane.f32.xlu0 %v3301
        %v3306 = vpop.xlane.xlu0 %3305
        %3307 = vadd.xlane.f32.xlu0 %v3302
        %v3308 = vpop.xlane.xlu0 %3307
        %v3309 = vrcp.pop %v3304
        %v3310 = vmul.f32 %v3304, %v3309
        %v3311 = vsub.f32 1.0, %v3310
        %v3312 = vmul.f32 %v3309, %v3311
        %v3313 = vadd.f32 %v3309, %v3312
        %vm3314 = vweird.f32 %v3304
        %vm3315 = vweird.f32 %v3309
        %vm3316 = vmor %vm3314, %vm3315
        %v3317 = vsel %vm3316, %v3309, %v3313
        %v3318 = vand.u32 2147483647, %v3304
        %vm3319 = vcmp.eq.f32.partialorder %v3318, 8.507059e+37
        %v3320 = vand.u32 %v3304, 2147483648
        %v3321 = vor.u32 1.1754944e-38, %v3320
        %v3322 = vsel %vm3319, %v3321, %v3317
        %v3323 = vmul.f32 %v3300, %v3322
        %v3324 = vrcp.pop %v3306
        %v3325 = vmul.f32 %v3306, %v3324
        %v3326 = vsub.f32 1.0, %v3325
        %v3327 = vmul.f32 %v3324, %v3326
        %v3328 = vadd.f32 %v3324, %v3327
        %vm3329 = vweird.f32 %v3306
        %vm3330 = vweird.f32 %v3324
        %vm3331 = vmor %vm3329, %vm3330
        %v3332 = vsel %vm3331, %v3324, %v3328
        %v3333 = vand.u32 2147483647, %v3306
        %vm3334 = vcmp.eq.f32.partialorder %v3333, 8.507059e+37
        %v3335 = vand.u32 %v3306, 2147483648
        %v3336 = vor.u32 1.1754944e-38, %v3335
        %v3337 = vsel %vm3334, %v3336, %v3332
        %v3338 = vmul.f32 %v3301, %v3337
        %v3339 = vrcp.pop %v3308
        %v3340 = vmul.f32 %v3308, %v3339
        %v3341 = vsub.f32 1.0, %v3340
        %v3342 = vmul.f32 %v3339, %v3341
        %v3343 = vadd.f32 %v3339, %v3342
        %vm3344 = vweird.f32 %v3308
        %vm3345 = vweird.f32 %v3339
        %vm3346 = vmor %vm3344, %vm3345
        %v3347 = vsel %vm3346, %v3339, %v3343
        %v3348 = vand.u32 2147483647, %v3308
        %vm3349 = vcmp.eq.f32.partialorder %v3348, 8.507059e+37
        %v3350 = vand.u32 %v3308, 2147483648
        %v3351 = vor.u32 1.1754944e-38, %v3350
        %v3352 = vsel %vm3349, %v3351, %v3347
        %v3353 = vmul.f32 %v3302, %v3352
        %3354 = vst [vmem:[%s324] sm:$0xff] %v3323
        %3355 = vst [vmem:[%s324 + $0x8] sm:$0xff] %v3338
        %3356 = vst [vmem:[%s324 + $0x10] sm:$0xff] %v3353
        %s3357 = sand.u32 %s185, 1
        %s3358 = scalar_lea.sflag [#allocation4], %s3357
        %s3359 = sand.u32 %s185, 1
        %s3360 = smul.addr %s3359, 24
        %s3361 = scalar_lea.vmem [#allocation7], %s3360
        // Predicated region
        $region57: #{tpu_custom_call.1} parent=47 // pred_check
          %p3362 = pneg %p195
        $region58: #{tpu_custom_call.1} parent=47 // pred_check_branch
          %3364 = sbr.rel (%p3362) target = $region60
        $region59: #{tpu_custom_call.1} parent=47 // pred_region
          %s3365 = smul.u32 3, %s25
          %s3366 = ssub.s32 5, %s3365
          %p3367 = scmp.lt.s32.totalorder %s3366, 3
          %s3368 = scalar_select %p3367, %s3366, 3
          %s3369 = smul.u32 8, %s3368
          %s3370 = ssub.s32 24, %s3369
          %s3371 = sshll.u32 %s3370, 4
          %3372 = vsyncadd %s3358, %s3371
          %p3373 = scmp.ne.s32.totalorder 0, %s3369
          %s3374 = smul.addr %s3365, 8
          %s3375 = scalar_lea.hbm %s7, %s3374
          %s3376 = smul.u32 8, %s3368
          %s3377 = sshll.u32 %s3361, 4
          %s3378 = int_to_ptr.vmem [resolvable:$true] %s3377
          %s3379 = sshll.u32 %s3375, 4
          %s3380 = int_to_ptr.hbm [resolvable:$true] %s3379
          %s3381 = sshll.u32 %s3376, 4
          %3385 = dma.vmem_to_hbm [thread:$0]  (%p3373), %s3378, %s3381, %s3380, %s3358, 128, 128, 8
        $region60: #{tpu_custom_call.1} parent=47 // pred_fallthru
          _
      $region48: #{tpu_custom_call.1} parent=5 // pred_fallthru
        _
      %p3386 = scmp.le.s32.totalorder 2, %s20
      // Predicated region
      $region61: #{tpu_custom_call.1} parent=5 // pred_check
        %p3387 = pneg %p3386
      $region62: #{tpu_custom_call.1} parent=5 // pred_check_branch
        %3389 = sbr.rel (%p3387) target = $region64
      $region63: #{tpu_custom_call.1} parent=5 // pred_region
        %s3390 = ssub.s32 %s20, 2
        // Predicated region
        $region65: #{tpu_custom_call.1} parent=63 // pred_check
          %p3391 = pneg %p201
        $region66: #{tpu_custom_call.1} parent=63 // pred_check_branch
          %3393 = sbr.rel (%p3391) target = $region68
        $region67: #{tpu_custom_call.1} parent=63 // pred_region
          %s3394 = sand.u32 %s186, 1
          %s3395 = scalar_lea.sflag [#allocation4], %s3394
          %s3396 = sand.u32 %s186, 1
          %s3397 = smul.addr %s3396, 24
          %s3398 = scalar_lea.vmem [#allocation7], %s3397
          %3400 = dma.done %s3395, 384
        $region68: #{tpu_custom_call.1} parent=63 // pred_fallthru
          _
      $region64: #{tpu_custom_call.1} parent=5 // pred_fallthru
        _
    $region6: #{tpu_custom_call.1} parent=1 // loop_footer
      %s24 = sadd.s32 1, %s20
    $region7: #{tpu_custom_call.1} parent=1 // loop_footer_branch
      %19 = sbr.rel target = $region3
    $region8: #{tpu_custom_call.1} parent=1 // loop_exit
      _
    %3401 = vsyncpa [#allocation3], 1
    %s3402 = scalar_lea.sflag [#allocation3], 1
    %3403 = vsyncpa %s3402, 1
    %3404 = vsyncpa [#allocation6], 1
    %3405 = vsyncpa [#allocation4], 1
    %s3406 = scalar_lea.sflag [#allocation4], 1
    %3407 = vsyncpa %s3406, 1

</llo_original>
